<compile_context>
chip_gen: v5e
topology: v5e:2x2
jax: 0.10.0
libtpu: 0.0.40
codegen_flags: <defaults>
</compile_context>

<pallas_src>
import functools

import jax
import jax.numpy as jnp
from jax.experimental import pallas as pl
from jax.experimental.pallas import tpu as pltpu


# ----------------------------------------------------------------------------
# Pallas kernel: fused 3x3x3 conv taps for one (batch, depth) output plane.
#
# Refs (size-1 N / D block dims are squeezed away):
#   x0/x1/x2 : (Cin, Lpad) bf16   padded input planes at padded depths d, d+1, d+2
#   w        : (27, Cout, Cin) bf16   taps ordered t = (kd*3 + kh)*3 + kw
#   b        : (Cout, 1) f32
#   o        : (Cout, L) out_dtype   output plane in padded (Hp*Wp) coordinates
#
# Each in-plane tap (kh, kw) is a static lane slice at offset
# side + (kh-1)*Wp + (kw-1); 27 (Cout,Cin)@(Cin,L) matmuls accumulate in f32.
# Only the interior of the padded output plane is valid; the wrapper slices it.
# ----------------------------------------------------------------------------
def _conv3d_tap_kernel(x0_ref, x1_ref, x2_ref, w_ref, b_ref, o_ref,
                       *, act, Wp, L, side):
    cout = o_ref.shape[0]
    acc = jnp.zeros((cout, L), jnp.float32)
    for kd, x_ref in enumerate((x0_ref, x1_ref, x2_ref)):
        a = x_ref[...]                                   # (Cin, Lpad) bf16
        for kh in range(3):
            for kw in range(3):
                off = side + (kh - 1) * Wp + (kw - 1)    # static, always >= 0
                a_s = a[:, off:off + L]                  # shifted tap view (Cin, L)
                t = (kd * 3 + kh) * 3 + kw
                acc = acc + jnp.dot(w_ref[t], a_s,
                                    preferred_element_type=jnp.float32)
    y = acc + b_ref[...]                                 # (Cout, L) + (Cout, 1)
    if act:
        y = jnp.where(y >= 0.0, y, 0.2 * y)              # LeakyReLU(0.2), f32
    o_ref[...] = y.astype(o_ref.dtype)


def _vmem_limit_bytes(cin, cout, L, Lpad, out_bytes):
    streamed = 3 * 2 * cin * Lpad * 2           # 3 plane operands, double-buffered, bf16
    outbuf = 2 * cout * L * out_bytes           # output block, double-buffered
    resident = 27 * cout * cin * 2 + cout * 4   # weights + bias
    temps = cout * L * 4 + 3 * cin * L * 2      # f32 accumulator + shifted-slab temps
    est = int(1.5 * (streamed + outbuf + resident + temps)) + (2 << 20)
    return max(32 << 20, min(est, 48 << 20))    # stay within v7x's 64 MiB physical


def conv3d_3x3x3(x, w, b, *, act, out_dtype):
    """3x3x3 Conv3D, stride 1, zero-pad 1, all 27 taps fused in one Pallas kernel.

    x: (N, D, C, H, W); w: (27, Cout, C) bf16; b: (Cout, 1) f32.
    Returns (N, D, Cout, H, W) in out_dtype.
    """
    x = x.astype(jnp.bfloat16)
    N, D, C, H, W = x.shape
    Cout = w.shape[1]
    Hp, Wp = H + 2, W + 2
    L = Hp * Wp
    side = Wp + 1                               # max |in-plane tap offset|
    Lpad = L + 2 * side

    # Zero-pad D/H/W, flatten the (Hp, Wp) plane, and add lane-side guards so
    # every tap slice stays in bounds.  This costs ~1x (not 27x) extra HBM.
    xp = jnp.pad(x, ((0, 0), (1, 1), (0, 0), (1, 1), (1, 1)))   # (N, D+2, C, Hp, Wp)
    xp = xp.reshape(N, D + 2, C, L)
    xp = jnp.pad(xp, ((0, 0), (0, 0), (0, 0), (side, side)))    # (N, D+2, C, Lpad)

    kernel = functools.partial(_conv3d_tap_kernel, act=act, Wp=Wp, L=L, side=side)

    out = pl.pallas_call(
        kernel,
        out_shape=jax.ShapeDtypeStruct((N, D, Cout, L), out_dtype),
        grid=(N, D),
        in_specs=[
            # Same HBM array passed 3x with depth-shifted index maps (kd taps).
            pl.BlockSpec((None, None, C, Lpad), lambda n, d: (n, d, 0, 0)),
            pl.BlockSpec((None, None, C, Lpad), lambda n, d: (n, d + 1, 0, 0)),
            pl.BlockSpec((None, None, C, Lpad), lambda n, d: (n, d + 2, 0, 0)),
            pl.BlockSpec((27, Cout, C), lambda n, d: (0, 0, 0)),   # weights, resident
            pl.BlockSpec((Cout, 1), lambda n, d: (0, 0)),          # bias, resident
        ],
        out_specs=pl.BlockSpec((None, None, Cout, L), lambda n, d: (n, d, 0, 0)),
        compiler_params=pltpu.CompilerParams(
            dimension_semantics=("parallel", "parallel"),
            vmem_limit_bytes=_vmem_limit_bytes(
                C, Cout, L, Lpad, jnp.dtype(out_dtype).itemsize)),
    )(xp, xp, xp, w, b)

    out = out.reshape(N, D, Cout, Hp, Wp)[:, :, :, 1:H + 1, 1:W + 1]
    return out


# ----------------------------------------------------------------------------
# Pure-JAX tap-by-tap reference (matching dtypes) used only for verification.
# ----------------------------------------------------------------------------
def _conv3d_reference(x, w, b, *, act):
    x = x.astype(jnp.bfloat16)
    N, D, C, H, W = x.shape
    Cout = w.shape[1]
    xp = jnp.pad(x, ((0, 0), (1, 1), (0, 0), (1, 1), (1, 1)))
    acc = jnp.zeros((N, D, Cout, H, W), jnp.float32)
    for kd in range(3):
        for kh in range(3):
            for kw in range(3):
                t = (kd * 3 + kh) * 3 + kw
                patch = xp[:, kd:kd + D, :, kh:kh + H, kw:kw + W]
                acc = acc + jnp.einsum("ndchw,oc->ndohw", patch, w[t],
                                       preferred_element_type=jnp.float32)
    y = acc + b[:, 0][None, None, :, None, None]
    if act:
        y = jnp.where(y >= 0.0, y, 0.2 * y)
    return y


# ----------------------------------------------------------------------------
# Pool / upsample / warp / integrate helpers (layout: (N, D, C, H, W) for convs,
# channels-last (N, D, H, W, C) for the flow path).
# ----------------------------------------------------------------------------
def maxpool2(x):
    N, D, C, H, W = x.shape
    return x.reshape(N, D // 2, 2, C, H // 2, 2, W // 2, 2).max(axis=(2, 5, 7))


def upsample2(x):
    x = jnp.repeat(x, 2, axis=1)
    x = jnp.repeat(x, 2, axis=3)
    x = jnp.repeat(x, 2, axis=4)
    return x


def warp(vol, flow):
    """Trilinear warp.  vol: (N, D, H, W, C); flow: (N, D, H, W, 3) voxel offsets.
    TODO(synk): border clamping instead of grid_sample's zero padding."""
    N, D, H, W, C = vol.shape
    ft = flow.dtype
    base = jnp.stack(
        jnp.meshgrid(jnp.arange(D, dtype=ft), jnp.arange(H, dtype=ft),
                     jnp.arange(W, dtype=ft), indexing="ij"), axis=-1)
    coords = base[None] + flow
    d = jnp.clip(coords[..., 0], 0.0, D - 1.0)
    h = jnp.clip(coords[..., 1], 0.0, H - 1.0)
    w = jnp.clip(coords[..., 2], 0.0, W - 1.0)
    d0 = jnp.floor(d); h0 = jnp.floor(h); w0 = jnp.floor(w)
    d1 = jnp.minimum(d0 + 1.0, D - 1.0)
    h1 = jnp.minimum(h0 + 1.0, H - 1.0)
    w1 = jnp.minimum(w0 + 1.0, W - 1.0)
    fd = (d - d0)[..., None]
    fh = (h - h0)[..., None]
    fw = (w - w0)[..., None]
    d0i, d1i = d0.astype(jnp.int32), d1.astype(jnp.int32)
    h0i, h1i = h0.astype(jnp.int32), h1.astype(jnp.int32)
    w0i, w1i = w0.astype(jnp.int32), w1.astype(jnp.int32)

    def flat(di, hi, wi):
        return (di * H + hi) * W + wi

    # One fused gather for all 8 corners (instead of 8 advanced-index gathers).
    idx = jnp.stack([flat(d0i, h0i, w0i), flat(d0i, h0i, w1i),
                     flat(d0i, h1i, w0i), flat(d0i, h1i, w1i),
                     flat(d1i, h0i, w0i), flat(d1i, h0i, w1i),
                     flat(d1i, h1i, w0i), flat(d1i, h1i, w1i)], axis=1)
    vol_flat = vol.reshape(N, D * H * W, C)
    corners = jnp.take_along_axis(
        vol_flat, idx.reshape(N, 8 * D * H * W)[..., None], axis=1)
    corners = corners.reshape(N, 8, D, H, W, C)
    c000, c001, c010, c011, c100, c101, c110, c111 = [corners[:, i] for i in range(8)]
    c00 = c000 * (1 - fw) + c001 * fw
    c01 = c010 * (1 - fw) + c011 * fw
    c10 = c100 * (1 - fw) + c101 * fw
    c11 = c110 * (1 - fw) + c111 * fw
    c0 = c00 * (1 - fh) + c01 * fh
    c1 = c10 * (1 - fh) + c11 * fh
    return c0 * (1 - fd) + c1 * fd


def vecint(flow, nsteps):
    """VecInt: scaling-and-squaring integration of a stationary velocity field."""
    flow = flow * (1.0 / (2 ** nsteps))
    for _ in range(nsteps):
        flow = flow + warp(flow, flow)
    return flow


def resize_flow(flow, factor):
    """ResizeTransform: trilinear spatial resize + rescale of displacements.
    TODO(synk): align_corners=False here vs VoxelMorph's align_corners=True."""
    N, D, H, W, C = flow.shape
    new_shape = (N, int(round(D * factor)), int(round(H * factor)),
                 int(round(W * factor)), C)
    if factor < 1.0:
        flow = jax.image.resize(flow, new_shape, method="trilinear")
        return flow * factor
    flow = flow * factor
    return jax.image.resize(flow, new_shape, method="trilinear")


# ----------------------------------------------------------------------------
# Parameters (stored in kernel-ready layout/dtype) and VxmDense-style network.
# ----------------------------------------------------------------------------
def init_conv(key, cin, cout, scale=0.1):
    w = (jax.random.normal(key, (27, cout, cin), jnp.float32) * scale
         ).astype(jnp.bfloat16)                  # taps (kd,kh,kw)-major, (Cout, Cin)
    b = jnp.zeros((cout, 1), jnp.float32)
    return (w, b)


def init_params(key, in_ch=2, enc_nf=(4, 8), dec_nf=(8, 4, 4), ndims=3):
    keys = iter(jax.random.split(key, 32))
    params = {"enc": [], "dec": [], "rem": []}
    prev = in_ch
    skips = []
    for nf in enc_nf:                            # encoder conv blocks
        params["enc"].append(init_conv(next(keys), prev, nf))
        skips.append(nf)
        prev = nf
    for i in range(len(enc_nf)):                 # decoder conv blocks (+skip concat)
        nf = dec_nf[i]
        params["dec"].append(init_conv(next(keys), prev, nf))
        prev = nf + skips.pop()
    for nf in dec_nf[len(enc_nf):]:              # remaining full-res convs
        params["rem"].append(init_conv(next(keys), prev, nf))
        prev = nf
    params["flow"] = init_conv(next(keys), prev, ndims, scale=1e-3)
    return params


def vxm_dense_forward(params, source, target, seg, *, int_steps=3, int_downsize=2):
    """source/target/seg channels-last (N, D, H, W, C); convs run in (N, D, C, H, W)."""
    to_ndchw = lambda t: jnp.transpose(t, (0, 1, 4, 2, 3))
    x = jnp.concatenate([to_ndchw(source), to_ndchw(target)],
                        axis=2).astype(jnp.bfloat16)
    hist = [x]
    for (w, b) in params["enc"]:
        x = conv3d_3x3x3(x, w, b, act=True, out_dtype=jnp.bfloat16)
        hist.append(x)
        x = maxpool2(x)
    for (w, b) in params["dec"]:
        x = conv3d_3x3x3(x, w, b, act=True, out_dtype=jnp.bfloat16)
        x = upsample2(x)
        x = jnp.concatenate([x, hist.pop()], axis=2)
    for (w, b) in params["rem"]:
        x = conv3d_3x3x3(x, w, b, act=True, out_dtype=jnp.bfloat16)
    wf, bf = params["flow"]
    flow_ndchw = conv3d_3x3x3(x, wf, bf, act=False, out_dtype=jnp.float32)
    flow = jnp.transpose(flow_ndchw, (0, 1, 3, 4, 2))            # (N, D, H, W, 3)

    pos_flow = resize_flow(flow, 1.0 / int_downsize)
    pos_flow = vecint(pos_flow, int_steps)
    pos_flow = resize_flow(pos_flow, float(int_downsize))

    moved = warp(source, pos_flow)
    moved_seg = warp(seg, pos_flow)
    return moved, moved_seg, pos_flow


def registration_subnet_forward(params, fixed, moving, seg,
                                *, int_steps=3, int_downsize=2):
    # Mirror torch: inputs = [moving, fixed, seg]; .float().permute(0,4,1,2,3)
    inputs = [moving, fixed, seg]
    inputs_ncdhw = [jnp.transpose(d.astype(jnp.float32), (0, 4, 1, 2, 3))
                    for d in inputs]
    moving_cl, fixed_cl, seg_cl = [jnp.transpose(d, (0, 2, 3, 4, 1))
                                   for d in inputs_ncdhw]
    moved, moved_seg, flow = vxm_dense_forward(
        params, moving_cl, fixed_cl, seg_cl,
        int_steps=int_steps, int_downsize=int_downsize)
    to_ncdhw = lambda t: jnp.transpose(t, (0, 4, 1, 2, 3))
    return to_ncdhw(moved), to_ncdhw(moved_seg), to_ncdhw(flow)


if __name__ == "__main__":
    key = jax.random.PRNGKey(0)
    k_param, k_fixed, k_moving, k_seg, k_chk_x, k_chk_w = jax.random.split(key, 6)

    # config: b_vector of size nb=2, enc_nf=[4,8], dec_nf=[8,4,4],
    #         int_steps=3, int_downsize=2; inshape=(8,8,8)
    nb = 2
    inshape = (8, 8, 8)
    enc_nf, dec_nf = (4, 8), (8, 4, 4)
    int_steps, int_downsize = 3, 2

    params = init_params(k_param, in_ch=2, enc_nf=enc_nf, dec_nf=dec_nf, ndims=3)

    # Correctness check of the fused-tap Pallas conv against a pure-JAX reference
    # with identical dtypes (loose tolerance: only accumulation order differs).
    xc = jax.random.normal(k_chk_x, (2, 8, 4, 8, 8), jnp.float32)
    wc, bc = init_conv(k_chk_w, 4, 8)
    got = jax.jit(functools.partial(conv3d_3x3x3, act=True,
                                    out_dtype=jnp.float32))(xc, wc, bc)
    want = jax.jit(functools.partial(_conv3d_reference, act=True))(xc, wc, bc)
    err = float(jnp.max(jnp.abs(got - want)))
    assert err < 5e-2, f"fused conv kernel mismatch: max abs err {err}"

    fixed = jax.random.normal(k_fixed, (nb, *inshape, 1), jnp.float32)
    moving = jax.random.normal(k_moving, (nb, *inshape, 1), jnp.float32)
    seg = (jax.random.uniform(k_seg, (nb, *inshape, 1)) > 0.5).astype(jnp.float32)

    fwd = jax.jit(functools.partial(registration_subnet_forward,
                                    int_steps=int_steps,
                                    int_downsize=int_downsize))
    moved, moved_seg, pos_flow = fwd(params, fixed, moving, seg)
    jax.block_until_ready((moved, moved_seg, pos_flow))

    assert moved.shape == (nb, 1, *inshape)
    assert moved_seg.shape == (nb, 1, *inshape)
    assert pos_flow.shape == (nb, 3, *inshape)
    assert bool(jnp.all(jnp.isfinite(moved)))
    assert bool(jnp.all(jnp.isfinite(pos_flow)))
    print("KERNEL_OK")
</pallas_src>

<mosaic_0001>
module attributes {stable_mosaic.version = 11 : i64} {
  func.func @_conv3d_tap_kernel(%arg0: i32, %arg1: i32, %arg2: memref<1x1x4x122xbf16, #tpu.memory_space<vmem>>, %arg3: memref<1x1x4x122xbf16, #tpu.memory_space<vmem>>, %arg4: memref<1x1x4x122xbf16, #tpu.memory_space<vmem>>, %arg5: memref<27x8x4xbf16, #tpu.memory_space<vmem>>, %arg6: memref<8x1xf32, #tpu.memory_space<vmem>>, %arg7: memref<1x1x8x100xf32, #tpu.memory_space<vmem>>) attributes {dimension_semantics = [#tpu.dimension_semantics<parallel>, #tpu.dimension_semantics<parallel>], iteration_bounds = array<i64: 2, 8>, scalar_prefetch = 0 : i64, scratch_operands = 0 : i64, tpu.core_type = #tpu.core_type<tc>, window_params = [{transform_indices = @transform_0, window_bounds = array<i64: 1, 1, 4, 122>}, {transform_indices = @transform_1, window_bounds = array<i64: 1, 1, 4, 122>}, {transform_indices = @transform_2, window_bounds = array<i64: 1, 1, 4, 122>}, {pipeline_mode = #tpu.pipeline_mode<synchronous>, transform_indices = @transform_3, window_bounds = array<i64: 27, 8, 4>}, {pipeline_mode = #tpu.pipeline_mode<synchronous>, transform_indices = @transform_4, window_bounds = array<i64: 8, 1>}, {transform_indices = @transform_5, window_bounds = array<i64: 1, 1, 8, 100>}]} {
    %cst = arith.constant 0.000000e+00 : f32
    %0 = vector.broadcast %cst : f32 to vector<8x100xf32>
    %c0 = arith.constant 0 : index
    %c0_0 = arith.constant 0 : index
    %c0_1 = arith.constant 0 : index
    %c0_2 = arith.constant 0 : index
    %1 = vector.load %arg2[%c0, %c0_0, %c0_1, %c0_2] : memref<1x1x4x122xbf16, #tpu.memory_space<vmem>>, vector<1x1x4x122xbf16>
    %2 = vector.shape_cast %1 : vector<1x1x4x122xbf16> to vector<4x122xbf16>
    %3 = vector.extract_strided_slice %2 {offsets = [0, 0], sizes = [4, 100], strides = [1, 1]} : vector<4x122xbf16> to vector<4x100xbf16>
    %c0_3 = arith.constant 0 : index
    %c0_4 = arith.constant 0 : index
    %c0_5 = arith.constant 0 : index
    %4 = vector.load %arg5[%c0_3, %c0_4, %c0_5] : memref<27x8x4xbf16, #tpu.memory_space<vmem>>, vector<1x8x4xbf16>
    %5 = vector.shape_cast %4 : vector<1x8x4xbf16> to vector<8x4xbf16>
    %cst_6 = arith.constant dense<0.000000e+00> : vector<8x100xf32>
    %6 = tpu.matmul %5, %3, %cst_6 {dimension_numbers = #tpu.dot_dimension_numbers<[1], [0], [0], [1], [0, 0, 1, 1], [], []>} : vector<8x4xbf16>, vector<4x100xbf16>, vector<8x100xf32> -> vector<8x100xf32>
    %7 = arith.addf %0, %6 : vector<8x100xf32>
    %8 = vector.extract_strided_slice %2 {offsets = [0, 1], sizes = [4, 100], strides = [1, 1]} : vector<4x122xbf16> to vector<4x100xbf16>
    %c1 = arith.constant 1 : index
    %c0_7 = arith.constant 0 : index
    %c0_8 = arith.constant 0 : index
    %9 = vector.load %arg5[%c1, %c0_7, %c0_8] : memref<27x8x4xbf16, #tpu.memory_space<vmem>>, vector<1x8x4xbf16>
    %10 = vector.shape_cast %9 : vector<1x8x4xbf16> to vector<8x4xbf16>
    %cst_9 = arith.constant dense<0.000000e+00> : vector<8x100xf32>
    %11 = tpu.matmul %10, %8, %cst_9 {dimension_numbers = #tpu.dot_dimension_numbers<[1], [0], [0], [1], [0, 0, 1, 1], [], []>} : vector<8x4xbf16>, vector<4x100xbf16>, vector<8x100xf32> -> vector<8x100xf32>
    %12 = arith.addf %7, %11 : vector<8x100xf32>
    %13 = vector.extract_strided_slice %2 {offsets = [0, 2], sizes = [4, 100], strides = [1, 1]} : vector<4x122xbf16> to vector<4x100xbf16>
    %c2 = arith.constant 2 : index
    %c0_10 = arith.constant 0 : index
    %c0_11 = arith.constant 0 : index
    %14 = vector.load %arg5[%c2, %c0_10, %c0_11] : memref<27x8x4xbf16, #tpu.memory_space<vmem>>, vector<1x8x4xbf16>
    %15 = vector.shape_cast %14 : vector<1x8x4xbf16> to vector<8x4xbf16>
    %cst_12 = arith.constant dense<0.000000e+00> : vector<8x100xf32>
    %16 = tpu.matmul %15, %13, %cst_12 {dimension_numbers = #tpu.dot_dimension_numbers<[1], [0], [0], [1], [0, 0, 1, 1], [], []>} : vector<8x4xbf16>, vector<4x100xbf16>, vector<8x100xf32> -> vector<8x100xf32>
    %17 = arith.addf %12, %16 : vector<8x100xf32>
    %18 = vector.extract_strided_slice %2 {offsets = [0, 10], sizes = [4, 100], strides = [1, 1]} : vector<4x122xbf16> to vector<4x100xbf16>
    %c3 = arith.constant 3 : index
    %c0_13 = arith.constant 0 : index
    %c0_14 = arith.constant 0 : index
    %19 = vector.load %arg5[%c3, %c0_13, %c0_14] : memref<27x8x4xbf16, #tpu.memory_space<vmem>>, vector<1x8x4xbf16>
    %20 = vector.shape_cast %19 : vector<1x8x4xbf16> to vector<8x4xbf16>
    %cst_15 = arith.constant dense<0.000000e+00> : vector<8x100xf32>
    %21 = tpu.matmul %20, %18, %cst_15 {dimension_numbers = #tpu.dot_dimension_numbers<[1], [0], [0], [1], [0, 0, 1, 1], [], []>} : vector<8x4xbf16>, vector<4x100xbf16>, vector<8x100xf32> -> vector<8x100xf32>
    %22 = arith.addf %17, %21 : vector<8x100xf32>
    %23 = vector.extract_strided_slice %2 {offsets = [0, 11], sizes = [4, 100], strides = [1, 1]} : vector<4x122xbf16> to vector<4x100xbf16>
    %c4 = arith.constant 4 : index
    %c0_16 = arith.constant 0 : index
    %c0_17 = arith.constant 0 : index
    %24 = vector.load %arg5[%c4, %c0_16, %c0_17] : memref<27x8x4xbf16, #tpu.memory_space<vmem>>, vector<1x8x4xbf16>
    %25 = vector.shape_cast %24 : vector<1x8x4xbf16> to vector<8x4xbf16>
    %cst_18 = arith.constant dense<0.000000e+00> : vector<8x100xf32>
    %26 = tpu.matmul %25, %23, %cst_18 {dimension_numbers = #tpu.dot_dimension_numbers<[1], [0], [0], [1], [0, 0, 1, 1], [], []>} : vector<8x4xbf16>, vector<4x100xbf16>, vector<8x100xf32> -> vector<8x100xf32>
    %27 = arith.addf %22, %26 : vector<8x100xf32>
    %28 = vector.extract_strided_slice %2 {offsets = [0, 12], sizes = [4, 100], strides = [1, 1]} : vector<4x122xbf16> to vector<4x100xbf16>
    %c5 = arith.constant 5 : index
    %c0_19 = arith.constant 0 : index
    %c0_20 = arith.constant 0 : index
    %29 = vector.load %arg5[%c5, %c0_19, %c0_20] : memref<27x8x4xbf16, #tpu.memory_space<vmem>>, vector<1x8x4xbf16>
    %30 = vector.shape_cast %29 : vector<1x8x4xbf16> to vector<8x4xbf16>
    %cst_21 = arith.constant dense<0.000000e+00> : vector<8x100xf32>
    %31 = tpu.matmul %30, %28, %cst_21 {dimension_numbers = #tpu.dot_dimension_numbers<[1], [0], [0], [1], [0, 0, 1, 1], [], []>} : vector<8x4xbf16>, vector<4x100xbf16>, vector<8x100xf32> -> vector<8x100xf32>
    %32 = arith.addf %27, %31 : vector<8x100xf32>
    %33 = vector.extract_strided_slice %2 {offsets = [0, 20], sizes = [4, 100], strides = [1, 1]} : vector<4x122xbf16> to vector<4x100xbf16>
    %c6 = arith.constant 6 : index
    %c0_22 = arith.constant 0 : index
    %c0_23 = arith.constant 0 : index
    %34 = vector.load %arg5[%c6, %c0_22, %c0_23] : memref<27x8x4xbf16, #tpu.memory_space<vmem>>, vector<1x8x4xbf16>
    %35 = vector.shape_cast %34 : vector<1x8x4xbf16> to vector<8x4xbf16>
    %cst_24 = arith.constant dense<0.000000e+00> : vector<8x100xf32>
    %36 = tpu.matmul %35, %33, %cst_24 {dimension_numbers = #tpu.dot_dimension_numbers<[1], [0], [0], [1], [0, 0, 1, 1], [], []>} : vector<8x4xbf16>, vector<4x100xbf16>, vector<8x100xf32> -> vector<8x100xf32>
    %37 = arith.addf %32, %36 : vector<8x100xf32>
    %38 = vector.extract_strided_slice %2 {offsets = [0, 21], sizes = [4, 100], strides = [1, 1]} : vector<4x122xbf16> to vector<4x100xbf16>
    %c7 = arith.constant 7 : index
    %c0_25 = arith.constant 0 : index
    %c0_26 = arith.constant 0 : index
    %39 = vector.load %arg5[%c7, %c0_25, %c0_26] : memref<27x8x4xbf16, #tpu.memory_space<vmem>>, vector<1x8x4xbf16>
    %40 = vector.shape_cast %39 : vector<1x8x4xbf16> to vector<8x4xbf16>
    %cst_27 = arith.constant dense<0.000000e+00> : vector<8x100xf32>
    %41 = tpu.matmul %40, %38, %cst_27 {dimension_numbers = #tpu.dot_dimension_numbers<[1], [0], [0], [1], [0, 0, 1, 1], [], []>} : vector<8x4xbf16>, vector<4x100xbf16>, vector<8x100xf32> -> vector<8x100xf32>
    %42 = arith.addf %37, %41 : vector<8x100xf32>
    %43 = vector.extract_strided_slice %2 {offsets = [0, 22], sizes = [4, 100], strides = [1, 1]} : vector<4x122xbf16> to vector<4x100xbf16>
    %c8 = arith.constant 8 : index
    %c0_28 = arith.constant 0 : index
    %c0_29 = arith.constant 0 : index
    %44 = vector.load %arg5[%c8, %c0_28, %c0_29] : memref<27x8x4xbf16, #tpu.memory_space<vmem>>, vector<1x8x4xbf16>
    %45 = vector.shape_cast %44 : vector<1x8x4xbf16> to vector<8x4xbf16>
    %cst_30 = arith.constant dense<0.000000e+00> : vector<8x100xf32>
    %46 = tpu.matmul %45, %43, %cst_30 {dimension_numbers = #tpu.dot_dimension_numbers<[1], [0], [0], [1], [0, 0, 1, 1], [], []>} : vector<8x4xbf16>, vector<4x100xbf16>, vector<8x100xf32> -> vector<8x100xf32>
    %47 = arith.addf %42, %46 : vector<8x100xf32>
    %c0_31 = arith.constant 0 : index
    %c0_32 = arith.constant 0 : index
    %c0_33 = arith.constant 0 : index
    %c0_34 = arith.constant 0 : index
    %48 = vector.load %arg3[%c0_31, %c0_32, %c0_33, %c0_34] : memref<1x1x4x122xbf16, #tpu.memory_space<vmem>>, vector<1x1x4x122xbf16>
    %49 = vector.shape_cast %48 : vector<1x1x4x122xbf16> to vector<4x122xbf16>
    %50 = vector.extract_strided_slice %49 {offsets = [0, 0], sizes = [4, 100], strides = [1, 1]} : vector<4x122xbf16> to vector<4x100xbf16>
    %c9 = arith.constant 9 : index
    %c0_35 = arith.constant 0 : index
    %c0_36 = arith.constant 0 : index
    %51 = vector.load %arg5[%c9, %c0_35, %c0_36] : memref<27x8x4xbf16, #tpu.memory_space<vmem>>, vector<1x8x4xbf16>
    %52 = vector.shape_cast %51 : vector<1x8x4xbf16> to vector<8x4xbf16>
    %cst_37 = arith.constant dense<0.000000e+00> : vector<8x100xf32>
    %53 = tpu.matmul %52, %50, %cst_37 {dimension_numbers = #tpu.dot_dimension_numbers<[1], [0], [0], [1], [0, 0, 1, 1], [], []>} : vector<8x4xbf16>, vector<4x100xbf16>, vector<8x100xf32> -> vector<8x100xf32>
    %54 = arith.addf %47, %53 : vector<8x100xf32>
    %55 = vector.extract_strided_slice %49 {offsets = [0, 1], sizes = [4, 100], strides = [1, 1]} : vector<4x122xbf16> to vector<4x100xbf16>
    %c10 = arith.constant 10 : index
    %c0_38 = arith.constant 0 : index
    %c0_39 = arith.constant 0 : index
    %56 = vector.load %arg5[%c10, %c0_38, %c0_39] : memref<27x8x4xbf16, #tpu.memory_space<vmem>>, vector<1x8x4xbf16>
    %57 = vector.shape_cast %56 : vector<1x8x4xbf16> to vector<8x4xbf16>
    %cst_40 = arith.constant dense<0.000000e+00> : vector<8x100xf32>
    %58 = tpu.matmul %57, %55, %cst_40 {dimension_numbers = #tpu.dot_dimension_numbers<[1], [0], [0], [1], [0, 0, 1, 1], [], []>} : vector<8x4xbf16>, vector<4x100xbf16>, vector<8x100xf32> -> vector<8x100xf32>
    %59 = arith.addf %54, %58 : vector<8x100xf32>
    %60 = vector.extract_strided_slice %49 {offsets = [0, 2], sizes = [4, 100], strides = [1, 1]} : vector<4x122xbf16> to vector<4x100xbf16>
    %c11 = arith.constant 11 : index
    %c0_41 = arith.constant 0 : index
    %c0_42 = arith.constant 0 : index
    %61 = vector.load %arg5[%c11, %c0_41, %c0_42] : memref<27x8x4xbf16, #tpu.memory_space<vmem>>, vector<1x8x4xbf16>
    %62 = vector.shape_cast %61 : vector<1x8x4xbf16> to vector<8x4xbf16>
    %cst_43 = arith.constant dense<0.000000e+00> : vector<8x100xf32>
    %63 = tpu.matmul %62, %60, %cst_43 {dimension_numbers = #tpu.dot_dimension_numbers<[1], [0], [0], [1], [0, 0, 1, 1], [], []>} : vector<8x4xbf16>, vector<4x100xbf16>, vector<8x100xf32> -> vector<8x100xf32>
    %64 = arith.addf %59, %63 : vector<8x100xf32>
    %65 = vector.extract_strided_slice %49 {offsets = [0, 10], sizes = [4, 100], strides = [1, 1]} : vector<4x122xbf16> to vector<4x100xbf16>
    %c12 = arith.constant 12 : index
    %c0_44 = arith.constant 0 : index
    %c0_45 = arith.constant 0 : index
    %66 = vector.load %arg5[%c12, %c0_44, %c0_45] : memref<27x8x4xbf16, #tpu.memory_space<vmem>>, vector<1x8x4xbf16>
    %67 = vector.shape_cast %66 : vector<1x8x4xbf16> to vector<8x4xbf16>
    %cst_46 = arith.constant dense<0.000000e+00> : vector<8x100xf32>
    %68 = tpu.matmul %67, %65, %cst_46 {dimension_numbers = #tpu.dot_dimension_numbers<[1], [0], [0], [1], [0, 0, 1, 1], [], []>} : vector<8x4xbf16>, vector<4x100xbf16>, vector<8x100xf32> -> vector<8x100xf32>
    %69 = arith.addf %64, %68 : vector<8x100xf32>
    %70 = vector.extract_strided_slice %49 {offsets = [0, 11], sizes = [4, 100], strides = [1, 1]} : vector<4x122xbf16> to vector<4x100xbf16>
    %c13 = arith.constant 13 : index
    %c0_47 = arith.constant 0 : index
    %c0_48 = arith.constant 0 : index
    %71 = vector.load %arg5[%c13, %c0_47, %c0_48] : memref<27x8x4xbf16, #tpu.memory_space<vmem>>, vector<1x8x4xbf16>
    %72 = vector.shape_cast %71 : vector<1x8x4xbf16> to vector<8x4xbf16>
    %cst_49 = arith.constant dense<0.000000e+00> : vector<8x100xf32>
    %73 = tpu.matmul %72, %70, %cst_49 {dimension_numbers = #tpu.dot_dimension_numbers<[1], [0], [0], [1], [0, 0, 1, 1], [], []>} : vector<8x4xbf16>, vector<4x100xbf16>, vector<8x100xf32> -> vector<8x100xf32>
    %74 = arith.addf %69, %73 : vector<8x100xf32>
    %75 = vector.extract_strided_slice %49 {offsets = [0, 12], sizes = [4, 100], strides = [1, 1]} : vector<4x122xbf16> to vector<4x100xbf16>
    %c14 = arith.constant 14 : index
    %c0_50 = arith.constant 0 : index
    %c0_51 = arith.constant 0 : index
    %76 = vector.load %arg5[%c14, %c0_50, %c0_51] : memref<27x8x4xbf16, #tpu.memory_space<vmem>>, vector<1x8x4xbf16>
    %77 = vector.shape_cast %76 : vector<1x8x4xbf16> to vector<8x4xbf16>
    %cst_52 = arith.constant dense<0.000000e+00> : vector<8x100xf32>
    %78 = tpu.matmul %77, %75, %cst_52 {dimension_numbers = #tpu.dot_dimension_numbers<[1], [0], [0], [1], [0, 0, 1, 1], [], []>} : vector<8x4xbf16>, vector<4x100xbf16>, vector<8x100xf32> -> vector<8x100xf32>
    %79 = arith.addf %74, %78 : vector<8x100xf32>
    %80 = vector.extract_strided_slice %49 {offsets = [0, 20], sizes = [4, 100], strides = [1, 1]} : vector<4x122xbf16> to vector<4x100xbf16>
    %c15 = arith.constant 15 : index
    %c0_53 = arith.constant 0 : index
    %c0_54 = arith.constant 0 : index
    %81 = vector.load %arg5[%c15, %c0_53, %c0_54] : memref<27x8x4xbf16, #tpu.memory_space<vmem>>, vector<1x8x4xbf16>
    %82 = vector.shape_cast %81 : vector<1x8x4xbf16> to vector<8x4xbf16>
    %cst_55 = arith.constant dense<0.000000e+00> : vector<8x100xf32>
    %83 = tpu.matmul %82, %80, %cst_55 {dimension_numbers = #tpu.dot_dimension_numbers<[1], [0], [0], [1], [0, 0, 1, 1], [], []>} : vector<8x4xbf16>, vector<4x100xbf16>, vector<8x100xf32> -> vector<8x100xf32>
    %84 = arith.addf %79, %83 : vector<8x100xf32>
    %85 = vector.extract_strided_slice %49 {offsets = [0, 21], sizes = [4, 100], strides = [1, 1]} : vector<4x122xbf16> to vector<4x100xbf16>
    %c16 = arith.constant 16 : index
    %c0_56 = arith.constant 0 : index
    %c0_57 = arith.constant 0 : index
    %86 = vector.load %arg5[%c16, %c0_56, %c0_57] : memref<27x8x4xbf16, #tpu.memory_space<vmem>>, vector<1x8x4xbf16>
    %87 = vector.shape_cast %86 : vector<1x8x4xbf16> to vector<8x4xbf16>
    %cst_58 = arith.constant dense<0.000000e+00> : vector<8x100xf32>
    %88 = tpu.matmul %87, %85, %cst_58 {dimension_numbers = #tpu.dot_dimension_numbers<[1], [0], [0], [1], [0, 0, 1, 1], [], []>} : vector<8x4xbf16>, vector<4x100xbf16>, vector<8x100xf32> -> vector<8x100xf32>
    %89 = arith.addf %84, %88 : vector<8x100xf32>
    %90 = vector.extract_strided_slice %49 {offsets = [0, 22], sizes = [4, 100], strides = [1, 1]} : vector<4x122xbf16> to vector<4x100xbf16>
    %c17 = arith.constant 17 : index
    %c0_59 = arith.constant 0 : index
    %c0_60 = arith.constant 0 : index
    %91 = vector.load %arg5[%c17, %c0_59, %c0_60] : memref<27x8x4xbf16, #tpu.memory_space<vmem>>, vector<1x8x4xbf16>
    %92 = vector.shape_cast %91 : vector<1x8x4xbf16> to vector<8x4xbf16>
    %cst_61 = arith.constant dense<0.000000e+00> : vector<8x100xf32>
    %93 = tpu.matmul %92, %90, %cst_61 {dimension_numbers = #tpu.dot_dimension_numbers<[1], [0], [0], [1], [0, 0, 1, 1], [], []>} : vector<8x4xbf16>, vector<4x100xbf16>, vector<8x100xf32> -> vector<8x100xf32>
    %94 = arith.addf %89, %93 : vector<8x100xf32>
    %c0_62 = arith.constant 0 : index
    %c0_63 = arith.constant 0 : index
    %c0_64 = arith.constant 0 : index
    %c0_65 = arith.constant 0 : index
    %95 = vector.load %arg4[%c0_62, %c0_63, %c0_64, %c0_65] : memref<1x1x4x122xbf16, #tpu.memory_space<vmem>>, vector<1x1x4x122xbf16>
    %96 = vector.shape_cast %95 : vector<1x1x4x122xbf16> to vector<4x122xbf16>
    %97 = vector.extract_strided_slice %96 {offsets = [0, 0], sizes = [4, 100], strides = [1, 1]} : vector<4x122xbf16> to vector<4x100xbf16>
    %c18 = arith.constant 18 : index
    %c0_66 = arith.constant 0 : index
    %c0_67 = arith.constant 0 : index
    %98 = vector.load %arg5[%c18, %c0_66, %c0_67] : memref<27x8x4xbf16, #tpu.memory_space<vmem>>, vector<1x8x4xbf16>
    %99 = vector.shape_cast %98 : vector<1x8x4xbf16> to vector<8x4xbf16>
    %cst_68 = arith.constant dense<0.000000e+00> : vector<8x100xf32>
    %100 = tpu.matmul %99, %97, %cst_68 {dimension_numbers = #tpu.dot_dimension_numbers<[1], [0], [0], [1], [0, 0, 1, 1], [], []>} : vector<8x4xbf16>, vector<4x100xbf16>, vector<8x100xf32> -> vector<8x100xf32>
    %101 = arith.addf %94, %100 : vector<8x100xf32>
    %102 = vector.extract_strided_slice %96 {offsets = [0, 1], sizes = [4, 100], strides = [1, 1]} : vector<4x122xbf16> to vector<4x100xbf16>
    %c19 = arith.constant 19 : index
    %c0_69 = arith.constant 0 : index
    %c0_70 = arith.constant 0 : index
    %103 = vector.load %arg5[%c19, %c0_69, %c0_70] : memref<27x8x4xbf16, #tpu.memory_space<vmem>>, vector<1x8x4xbf16>
    %104 = vector.shape_cast %103 : vector<1x8x4xbf16> to vector<8x4xbf16>
    %cst_71 = arith.constant dense<0.000000e+00> : vector<8x100xf32>
    %105 = tpu.matmul %104, %102, %cst_71 {dimension_numbers = #tpu.dot_dimension_numbers<[1], [0], [0], [1], [0, 0, 1, 1], [], []>} : vector<8x4xbf16>, vector<4x100xbf16>, vector<8x100xf32> -> vector<8x100xf32>
    %106 = arith.addf %101, %105 : vector<8x100xf32>
    %107 = vector.extract_strided_slice %96 {offsets = [0, 2], sizes = [4, 100], strides = [1, 1]} : vector<4x122xbf16> to vector<4x100xbf16>
    %c20 = arith.constant 20 : index
    %c0_72 = arith.constant 0 : index
    %c0_73 = arith.constant 0 : index
    %108 = vector.load %arg5[%c20, %c0_72, %c0_73] : memref<27x8x4xbf16, #tpu.memory_space<vmem>>, vector<1x8x4xbf16>
    %109 = vector.shape_cast %108 : vector<1x8x4xbf16> to vector<8x4xbf16>
    %cst_74 = arith.constant dense<0.000000e+00> : vector<8x100xf32>
    %110 = tpu.matmul %109, %107, %cst_74 {dimension_numbers = #tpu.dot_dimension_numbers<[1], [0], [0], [1], [0, 0, 1, 1], [], []>} : vector<8x4xbf16>, vector<4x100xbf16>, vector<8x100xf32> -> vector<8x100xf32>
    %111 = arith.addf %106, %110 : vector<8x100xf32>
    %112 = vector.extract_strided_slice %96 {offsets = [0, 10], sizes = [4, 100], strides = [1, 1]} : vector<4x122xbf16> to vector<4x100xbf16>
    %c21 = arith.constant 21 : index
    %c0_75 = arith.constant 0 : index
    %c0_76 = arith.constant 0 : index
    %113 = vector.load %arg5[%c21, %c0_75, %c0_76] : memref<27x8x4xbf16, #tpu.memory_space<vmem>>, vector<1x8x4xbf16>
    %114 = vector.shape_cast %113 : vector<1x8x4xbf16> to vector<8x4xbf16>
    %cst_77 = arith.constant dense<0.000000e+00> : vector<8x100xf32>
    %115 = tpu.matmul %114, %112, %cst_77 {dimension_numbers = #tpu.dot_dimension_numbers<[1], [0], [0], [1], [0, 0, 1, 1], [], []>} : vector<8x4xbf16>, vector<4x100xbf16>, vector<8x100xf32> -> vector<8x100xf32>
    %116 = arith.addf %111, %115 : vector<8x100xf32>
    %117 = vector.extract_strided_slice %96 {offsets = [0, 11], sizes = [4, 100], strides = [1, 1]} : vector<4x122xbf16> to vector<4x100xbf16>
    %c22 = arith.constant 22 : index
    %c0_78 = arith.constant 0 : index
    %c0_79 = arith.constant 0 : index
    %118 = vector.load %arg5[%c22, %c0_78, %c0_79] : memref<27x8x4xbf16, #tpu.memory_space<vmem>>, vector<1x8x4xbf16>
    %119 = vector.shape_cast %118 : vector<1x8x4xbf16> to vector<8x4xbf16>
    %cst_80 = arith.constant dense<0.000000e+00> : vector<8x100xf32>
    %120 = tpu.matmul %119, %117, %cst_80 {dimension_numbers = #tpu.dot_dimension_numbers<[1], [0], [0], [1], [0, 0, 1, 1], [], []>} : vector<8x4xbf16>, vector<4x100xbf16>, vector<8x100xf32> -> vector<8x100xf32>
    %121 = arith.addf %116, %120 : vector<8x100xf32>
    %122 = vector.extract_strided_slice %96 {offsets = [0, 12], sizes = [4, 100], strides = [1, 1]} : vector<4x122xbf16> to vector<4x100xbf16>
    %c23 = arith.constant 23 : index
    %c0_81 = arith.constant 0 : index
    %c0_82 = arith.constant 0 : index
    %123 = vector.load %arg5[%c23, %c0_81, %c0_82] : memref<27x8x4xbf16, #tpu.memory_space<vmem>>, vector<1x8x4xbf16>
    %124 = vector.shape_cast %123 : vector<1x8x4xbf16> to vector<8x4xbf16>
    %cst_83 = arith.constant dense<0.000000e+00> : vector<8x100xf32>
    %125 = tpu.matmul %124, %122, %cst_83 {dimension_numbers = #tpu.dot_dimension_numbers<[1], [0], [0], [1], [0, 0, 1, 1], [], []>} : vector<8x4xbf16>, vector<4x100xbf16>, vector<8x100xf32> -> vector<8x100xf32>
    %126 = arith.addf %121, %125 : vector<8x100xf32>
    %127 = vector.extract_strided_slice %96 {offsets = [0, 20], sizes = [4, 100], strides = [1, 1]} : vector<4x122xbf16> to vector<4x100xbf16>
    %c24 = arith.constant 24 : index
    %c0_84 = arith.constant 0 : index
    %c0_85 = arith.constant 0 : index
    %128 = vector.load %arg5[%c24, %c0_84, %c0_85] : memref<27x8x4xbf16, #tpu.memory_space<vmem>>, vector<1x8x4xbf16>
    %129 = vector.shape_cast %128 : vector<1x8x4xbf16> to vector<8x4xbf16>
    %cst_86 = arith.constant dense<0.000000e+00> : vector<8x100xf32>
    %130 = tpu.matmul %129, %127, %cst_86 {dimension_numbers = #tpu.dot_dimension_numbers<[1], [0], [0], [1], [0, 0, 1, 1], [], []>} : vector<8x4xbf16>, vector<4x100xbf16>, vector<8x100xf32> -> vector<8x100xf32>
    %131 = arith.addf %126, %130 : vector<8x100xf32>
    %132 = vector.extract_strided_slice %96 {offsets = [0, 21], sizes = [4, 100], strides = [1, 1]} : vector<4x122xbf16> to vector<4x100xbf16>
    %c25 = arith.constant 25 : index
    %c0_87 = arith.constant 0 : index
    %c0_88 = arith.constant 0 : index
    %133 = vector.load %arg5[%c25, %c0_87, %c0_88] : memref<27x8x4xbf16, #tpu.memory_space<vmem>>, vector<1x8x4xbf16>
    %134 = vector.shape_cast %133 : vector<1x8x4xbf16> to vector<8x4xbf16>
    %cst_89 = arith.constant dense<0.000000e+00> : vector<8x100xf32>
    %135 = tpu.matmul %134, %132, %cst_89 {dimension_numbers = #tpu.dot_dimension_numbers<[1], [0], [0], [1], [0, 0, 1, 1], [], []>} : vector<8x4xbf16>, vector<4x100xbf16>, vector<8x100xf32> -> vector<8x100xf32>
    %136 = arith.addf %131, %135 : vector<8x100xf32>
    %137 = vector.extract_strided_slice %96 {offsets = [0, 22], sizes = [4, 100], strides = [1, 1]} : vector<4x122xbf16> to vector<4x100xbf16>
    %c26 = arith.constant 26 : index
    %c0_90 = arith.constant 0 : index
    %c0_91 = arith.constant 0 : index
    %138 = vector.load %arg5[%c26, %c0_90, %c0_91] : memref<27x8x4xbf16, #tpu.memory_space<vmem>>, vector<1x8x4xbf16>
    %139 = vector.shape_cast %138 : vector<1x8x4xbf16> to vector<8x4xbf16>
    %cst_92 = arith.constant dense<0.000000e+00> : vector<8x100xf32>
    %140 = tpu.matmul %139, %137, %cst_92 {dimension_numbers = #tpu.dot_dimension_numbers<[1], [0], [0], [1], [0, 0, 1, 1], [], []>} : vector<8x4xbf16>, vector<4x100xbf16>, vector<8x100xf32> -> vector<8x100xf32>
    %141 = arith.addf %136, %140 : vector<8x100xf32>
    %c0_93 = arith.constant 0 : index
    %c0_94 = arith.constant 0 : index
    %142 = vector.load %arg6[%c0_93, %c0_94] : memref<8x1xf32, #tpu.memory_space<vmem>>, vector<8x1xf32>
    %143 = vector.broadcast %142 : vector<8x1xf32> to vector<8x100xf32>
    %144 = arith.addf %141, %143 : vector<8x100xf32>
    %cst_95 = arith.constant 0.000000e+00 : f32
    %145 = vector.broadcast %cst_95 : f32 to vector<8x100xf32>
    %146 = arith.cmpf oge, %144, %145 : vector<8x100xf32>
    %cst_96 = arith.constant 2.000000e-01 : f32
    %147 = vector.broadcast %cst_96 : f32 to vector<8x100xf32>
    %148 = arith.mulf %147, %144 : vector<8x100xf32>
    %149 = arith.select %146, %144, %148 : vector<8x100xi1>, vector<8x100xf32>
    %c0_97 = arith.constant 0 : index
    %c0_98 = arith.constant 0 : index
    %c0_99 = arith.constant 0 : index
    %c0_100 = arith.constant 0 : index
    %150 = vector.load %arg7[%c0_97, %c0_98, %c0_99, %c0_100] : memref<1x1x8x100xf32, #tpu.memory_space<vmem>>, vector<1x1x8x100xf32>
    %151 = vector.shape_cast %150 : vector<1x1x8x100xf32> to vector<8x100xf32>
    %152 = vector.shape_cast %149 : vector<8x100xf32> to vector<1x1x8x100xf32>
    tpu.vector_store %arg7[%c0_97, %c0_98, %c0_99, %c0_100], %152 {strides = array<i32>} : memref<1x1x8x100xf32, #tpu.memory_space<vmem>>, vector<1x1x8x100xf32>,
    return
  }
  func.func @transform_0(%arg0: i32, %arg1: i32) -> (i32, i32, i32, i32) {
    %c0_i32 = arith.constant 0 : i32
    %c0_i32_0 = arith.constant 0 : i32
    %c0_i32_1 = arith.constant 0 : i32
    return %arg0, %arg1, %c0_i32, %c0_i32_0 : i32, i32, i32, i32
  }
  func.func @transform_1(%arg0: i32, %arg1: i32) -> (i32, i32, i32, i32) {
    %c1_i32 = arith.constant 1 : i32
    %0 = arith.addi %arg1, %c1_i32 : i32
    %c0_i32 = arith.constant 0 : i32
    %c0_i32_0 = arith.constant 0 : i32
    %c0_i32_1 = arith.constant 0 : i32
    return %arg0, %0, %c0_i32, %c0_i32_0 : i32, i32, i32, i32
  }
  func.func @transform_2(%arg0: i32, %arg1: i32) -> (i32, i32, i32, i32) {
    %c2_i32 = arith.constant 2 : i32
    %0 = arith.addi %arg1, %c2_i32 : i32
    %c0_i32 = arith.constant 0 : i32
    %c0_i32_0 = arith.constant 0 : i32
    %c0_i32_1 = arith.constant 0 : i32
    return %arg0, %0, %c0_i32, %c0_i32_0 : i32, i32, i32, i32
  }
  func.func @transform_3(%arg0: i32, %arg1: i32) -> (i32, i32, i32) {
    %c0_i32 = arith.constant 0 : i32
    %c0_i32_0 = arith.constant 0 : i32
    %c0_i32_1 = arith.constant 0 : i32
    %c0_i32_2 = arith.constant 0 : i32
    return %c0_i32, %c0_i32_0, %c0_i32_1 : i32, i32, i32
  }
  func.func @transform_4(%arg0: i32, %arg1: i32) -> (i32, i32) {
    %c0_i32 = arith.constant 0 : i32
    %c0_i32_0 = arith.constant 0 : i32
    %c0_i32_1 = arith.constant 0 : i32
    return %c0_i32, %c0_i32_0 : i32, i32
  }
  func.func @transform_5(%arg0: i32, %arg1: i32) -> (i32, i32, i32, i32) {
    %c0_i32 = arith.constant 0 : i32
    %c0_i32_0 = arith.constant 0 : i32
    %c0_i32_1 = arith.constant 0 : i32
    return %arg0, %arg1, %c0_i32, %c0_i32_0 : i32, i32, i32, i32
  }
}

</mosaic_0001>

<llo_original>
// kernel: conv3d_3x3x3.1
$region0: #{conv3d_3x3x3.1}
  #allocation0 [shape = 'u32[]', space=smem, size = 0x4, offset = 0x4, fixed_abs, tag = 'smem constant byte address 0x4 - core index']
  #allocation1 [shape = 'u32[72,128]{1,0:T(1,128)}', space=vmem, size = 0x9000, scoped, tag = 'internal scratch']
  %s0 = inlined_call_operand.vmem [shape: bf16[2,10,4,122], index: 0, kind: input, shape index: {}, may-alias: {0,1,2}]
  %s1 = inlined_call_operand.vmem [shape: bf16[2,10,4,122], index: 1, kind: input, shape index: {}, may-alias: {0,1,2}]
  %s2 = inlined_call_operand.vmem [shape: bf16[2,10,4,122], index: 2, kind: input, shape index: {}, may-alias: {0,1,2}]
  %s3 = inlined_call_operand.vmem [shape: bf16[27,8,4], index: 3, kind: input, shape index: {}]
  %s4 = inlined_call_operand.vmem [shape: f32[8,1], index: 4, kind: input, shape index: {}]
  %s5 = inlined_call_operand.vmem [shape: f32[2,8,8,100], index: 5, kind: output, shape index: {}]
  %s6 = sld [smem:[#allocation0]]
  $region53: #{conv3d_3x3x3.1} parent=0
    _
  %s8 = ssub.s32 1, %s6
  %s9 = scalar_select 0, %s8, %s6
  loop: start=0, step=1, limit=18
  $region2: #{conv3d_3x3x3.1} parent=0 // loop_pre_header
    _
  $region3: #{conv3d_3x3x3.1} parent=0 // loop_header
    %s11 = sphi 0, %s15
    %p12 = scmp.ge.s32.totalorder %s11, 18
    %s18 = sphi 0, %s30
    %s19 = sphi 0, %s26
    %s20 = sphi 0, %s18
    %s21 = sphi 0, %s19
    %s22 = sphi 0, %s20
    %s23 = sphi 0, %s21
    %s35 = sphi 0, %s37
    %s38 = sphi 0, %s35
    %s39 = sphi 0, %s38
    %s55 = sphi 0, %s39
    %s65 = sphi 0, %s67
    %s68 = sphi 0, %s65
    %s69 = sphi 0, %s68
    %s85 = sphi 0, %s69
    %s95 = sphi 0, %s97
    %s98 = sphi 0, %s95
    %s99 = sphi 0, %s98
    %s115 = sphi 0, %s99
    %s119 = sphi 0, %s119
    %s121 = sphi 0, %s119
    %s122 = sphi 0, %s121
    %s136 = sphi 0, %s122
    %s140 = sphi 0, %s140
    %s142 = sphi 0, %s140
    %s143 = sphi 0, %s142
    %s157 = sphi 0, %s143
    %s165 = sphi 0, %s167
    %s168 = sphi 0, %s165
    %s169 = sphi 0, %s168
    %s185 = sphi 0, %s169
  $region4: #{conv3d_3x3x3.1} parent=0 // loop_header_branch
    %14 = sbr.rel (%p12) target = $region8
  $region5: #{conv3d_3x3x3.1} parent=0 // loop_body
    %s16 = ssub.s32 %s11, 1
    %s17 = ssub.s32 %s11, 2
    %s24 = sadd.s32 1, %s19
    %p25 = scmp.ge.s32.totalorder %s24, 8
    %s26 = scalar_select %p25, 0, %s24
    %s27 = sadd.s32 1, %s18
    %s28 = scalar_select %p25, %s27, %s18
    %p29 = scmp.ge.s32.totalorder %s28, 2
    %s30 = scalar_select %p29, 0, %s28
    %s31 = ssub.s32 %s18, %s30
    %s32 = ssub.s32 %s19, %s26
    %s33 = sor.u32 %s31, %s32
    %p34 = scmp.eq.s32.totalorder %s33, 0
    %s36 = sadd.s32 %s35, 1
    %s37 = scalar_select %p34, %s35, %s36
    %p40 = pneg %p34
    %p41 = scmp.eq.s32.totalorder %s11, 15
    %p42 = por %p40, %p41
    %p43 = scmp.ne.s32.totalorder %s35, %s38
    %p44 = scmp.eq.s32.totalorder %s11, 0
    %p45 = por %p43, %p44
    %p46 = scmp.ne.s32.totalorder %s35, %s38
    %p47 = scmp.eq.s32.totalorder %s16, 15
    %p48 = por %p46, %p47
    %p49 = scmp.ne.s32.totalorder %s38, %s39
    %p50 = scmp.eq.s32.totalorder %s16, 0
    %p51 = por %p49, %p50
    %p52 = scmp.ne.s32.totalorder %s38, %s39
    %p53 = scmp.eq.s32.totalorder %s17, 15
    %p54 = por %p52, %p53
    %p56 = scmp.ne.s32.totalorder %s39, %s55
    %p57 = scmp.eq.s32.totalorder %s17, 0
    %p58 = por %p56, %p57
    %s59 = sadd.s32 %s19, 1
    %s60 = sadd.s32 %s26, 1
    %s61 = ssub.s32 %s18, %s30
    %s62 = ssub.s32 %s59, %s60
    %s63 = sor.u32 %s61, %s62
    %p64 = scmp.eq.s32.totalorder %s63, 0
    %s66 = sadd.s32 %s65, 1
    %s67 = scalar_select %p64, %s65, %s66
    %p70 = pneg %p64
    %p71 = scmp.eq.s32.totalorder %s11, 15
    %p72 = por %p70, %p71
    %p73 = scmp.ne.s32.totalorder %s65, %s68
    %p74 = scmp.eq.s32.totalorder %s11, 0
    %p75 = por %p73, %p74
    %p76 = scmp.ne.s32.totalorder %s65, %s68
    %p77 = scmp.eq.s32.totalorder %s16, 15
    %p78 = por %p76, %p77
    %p79 = scmp.ne.s32.totalorder %s68, %s69
    %p80 = scmp.eq.s32.totalorder %s16, 0
    %p81 = por %p79, %p80
    %p82 = scmp.ne.s32.totalorder %s68, %s69
    %p83 = scmp.eq.s32.totalorder %s17, 15
    %p84 = por %p82, %p83
    %p86 = scmp.ne.s32.totalorder %s69, %s85
    %p87 = scmp.eq.s32.totalorder %s17, 0
    %p88 = por %p86, %p87
    %s89 = sadd.s32 %s19, 2
    %s90 = sadd.s32 %s26, 2
    %s91 = ssub.s32 %s18, %s30
    %s92 = ssub.s32 %s89, %s90
    %s93 = sor.u32 %s91, %s92
    %p94 = scmp.eq.s32.totalorder %s93, 0
    %s96 = sadd.s32 %s95, 1
    %s97 = scalar_select %p94, %s95, %s96
    %p100 = pneg %p94
    %p101 = scmp.eq.s32.totalorder %s11, 15
    %p102 = por %p100, %p101
    %p103 = scmp.ne.s32.totalorder %s95, %s98
    %p104 = scmp.eq.s32.totalorder %s11, 0
    %p105 = por %p103, %p104
    %p106 = scmp.ne.s32.totalorder %s95, %s98
    %p107 = scmp.eq.s32.totalorder %s16, 15
    %p108 = por %p106, %p107
    %p109 = scmp.ne.s32.totalorder %s98, %s99
    %p110 = scmp.eq.s32.totalorder %s16, 0
    %p111 = por %p109, %p110
    %p112 = scmp.ne.s32.totalorder %s98, %s99
    %p113 = scmp.eq.s32.totalorder %s17, 15
    %p114 = por %p112, %p113
    %p116 = scmp.ne.s32.totalorder %s99, %s115
    %p117 = scmp.eq.s32.totalorder %s17, 0
    %p118 = por %p116, %p117
    %s120 = sadd.s32 %s119, 1
    %p123 = scmp.eq.s32.totalorder %s11, 15
    %p124 = scmp.ne.s32.totalorder %s119, %s121
    %p125 = scmp.eq.s32.totalorder %s11, 0
    %p126 = por %p124, %p125
    %p127 = scmp.ne.s32.totalorder %s119, %s121
    %p128 = scmp.eq.s32.totalorder %s16, 15
    %p129 = por %p127, %p128
    %p130 = scmp.ne.s32.totalorder %s121, %s122
    %p131 = scmp.eq.s32.totalorder %s16, 0
    %p132 = por %p130, %p131
    %p133 = scmp.ne.s32.totalorder %s121, %s122
    %p134 = scmp.eq.s32.totalorder %s17, 15
    %p135 = por %p133, %p134
    %p137 = scmp.ne.s32.totalorder %s122, %s136
    %p138 = scmp.eq.s32.totalorder %s17, 0
    %p139 = por %p137, %p138
    %s141 = sadd.s32 %s140, 1
    %p144 = scmp.eq.s32.totalorder %s11, 15
    %p145 = scmp.ne.s32.totalorder %s140, %s142
    %p146 = scmp.eq.s32.totalorder %s11, 0
    %p147 = por %p145, %p146
    %p148 = scmp.ne.s32.totalorder %s140, %s142
    %p149 = scmp.eq.s32.totalorder %s16, 15
    %p150 = por %p148, %p149
    %p151 = scmp.ne.s32.totalorder %s142, %s143
    %p152 = scmp.eq.s32.totalorder %s16, 0
    %p153 = por %p151, %p152
    %p154 = scmp.ne.s32.totalorder %s142, %s143
    %p155 = scmp.eq.s32.totalorder %s17, 15
    %p156 = por %p154, %p155
    %p158 = scmp.ne.s32.totalorder %s143, %s157
    %p159 = scmp.eq.s32.totalorder %s17, 0
    %p160 = por %p158, %p159
    %s161 = ssub.s32 %s18, %s30
    %s162 = ssub.s32 %s19, %s26
    %s163 = sor.u32 %s161, %s162
    %p164 = scmp.eq.s32.totalorder %s163, 0
    %s166 = sadd.s32 %s165, 1
    %s167 = scalar_select %p164, %s165, %s166
    %p170 = pneg %p164
    %p171 = scmp.eq.s32.totalorder %s11, 15
    %p172 = por %p170, %p171
    %p173 = scmp.ne.s32.totalorder %s165, %s168
    %p174 = scmp.eq.s32.totalorder %s11, 0
    %p175 = por %p173, %p174
    %p176 = scmp.ne.s32.totalorder %s165, %s168
    %p177 = scmp.eq.s32.totalorder %s16, 15
    %p178 = por %p176, %p177
    %p179 = scmp.ne.s32.totalorder %s168, %s169
    %p180 = scmp.eq.s32.totalorder %s16, 0
    %p181 = por %p179, %p180
    %p182 = scmp.ne.s32.totalorder %s168, %s169
    %p183 = scmp.eq.s32.totalorder %s17, 15
    %p184 = por %p182, %p183
    %p186 = scmp.ne.s32.totalorder %s169, %s185
    %p187 = scmp.eq.s32.totalorder %s17, 0
    %p188 = por %p186, %p187
    %p189 = scmp.le.s32.totalorder 1, %s11
    %p190 = scmp.lt.s32.totalorder %s11, 17
    %p191 = pnand %p189, %p190
    %p192 = pneg %p191
    // Predicated region
    $region9: #{conv3d_3x3x3.1} parent=5 // pred_check
      _
    $region10: #{conv3d_3x3x3.1} parent=5 // pred_check_branch
      %194 = sbr.rel (%p191) target = $region12
    $region11: #{conv3d_3x3x3.1} parent=5 // pred_region
      %s195 = ssub.s32 %s11, 1
      // Predicated region
      $region13: #{conv3d_3x3x3.1} parent=11 // pred_check
        %p196 = pneg %p132
      $region14: #{conv3d_3x3x3.1} parent=11 // pred_check_branch
        %198 = sbr.rel (%p196) target = $region16
      $region15: #{conv3d_3x3x3.1} parent=11 // pred_region
        _
      $region16: #{conv3d_3x3x3.1} parent=11 // pred_fallthru
        _
      // Predicated region
      $region17: #{conv3d_3x3x3.1} parent=11 // pred_check
        %p199 = pneg %p153
      $region18: #{conv3d_3x3x3.1} parent=11 // pred_check_branch
        %201 = sbr.rel (%p199) target = $region20
      $region19: #{conv3d_3x3x3.1} parent=11 // pred_region
        _
      $region20: #{conv3d_3x3x3.1} parent=11 // pred_fallthru
        _
    $region12: #{conv3d_3x3x3.1} parent=5 // pred_fallthru
      _
    %p202 = scmp.lt.s32.totalorder %s11, 16
    // Predicated region
    $region21: #{conv3d_3x3x3.1} parent=5 // pred_check
      %p203 = pneg %p202
    $region22: #{conv3d_3x3x3.1} parent=5 // pred_check_branch
      %205 = sbr.rel (%p203) target = $region24
    $region23: #{conv3d_3x3x3.1} parent=5 // pred_region
      // Predicated region
      $region25: #{conv3d_3x3x3.1} parent=23 // pred_check
        %p206 = pneg %p45
      $region26: #{conv3d_3x3x3.1} parent=23 // pred_check_branch
        %208 = sbr.rel (%p206) target = $region28
      $region27: #{conv3d_3x3x3.1} parent=23 // pred_region
        %p209 = scmp.lt.s32.totalorder %s18, 1
        %s210 = scalar_select %p209, %s18, 1
        %p211 = scmp.lt.s32.totalorder %s19, 9
        %s212 = scalar_select %p211, %s19, 9
        %s213 = smul.addr %s210, 10
        %s214 = sadd.s32 %s212, %s213
        %s215 = smul.addr %s214, 2
        %s216 = scalar_lea.vmem %s0, %s215
      $region28: #{conv3d_3x3x3.1} parent=23 // pred_fallthru
        _
      // Predicated region
      $region29: #{conv3d_3x3x3.1} parent=23 // pred_check
        %p217 = pneg %p75
      $region30: #{conv3d_3x3x3.1} parent=23 // pred_check_branch
        %219 = sbr.rel (%p217) target = $region32
      $region31: #{conv3d_3x3x3.1} parent=23 // pred_region
        %s220 = sadd.s32 %s19, 1
        %p221 = scmp.lt.s32.totalorder %s18, 1
        %s222 = scalar_select %p221, %s18, 1
        %p223 = scmp.lt.s32.totalorder %s220, 9
        %s224 = scalar_select %p223, %s220, 9
        %s225 = smul.addr %s222, 10
        %s226 = sadd.s32 %s224, %s225
        %s227 = smul.addr %s226, 2
        %s228 = scalar_lea.vmem %s1, %s227
        %s229 = sadd.s32 %s19, 1
      $region32: #{conv3d_3x3x3.1} parent=23 // pred_fallthru
        _
      // Predicated region
      $region33: #{conv3d_3x3x3.1} parent=23 // pred_check
        %p230 = pneg %p105
      $region34: #{conv3d_3x3x3.1} parent=23 // pred_check_branch
        %232 = sbr.rel (%p230) target = $region36
      $region35: #{conv3d_3x3x3.1} parent=23 // pred_region
        %s233 = sadd.s32 %s19, 2
        %p234 = scmp.lt.s32.totalorder %s18, 1
        %s235 = scalar_select %p234, %s18, 1
        %p236 = scmp.lt.s32.totalorder %s233, 9
        %s237 = scalar_select %p236, %s233, 9
        %s238 = smul.addr %s235, 10
        %s239 = sadd.s32 %s237, %s238
        %s240 = smul.addr %s239, 2
        %s241 = scalar_lea.vmem %s2, %s240
        %s242 = sadd.s32 %s19, 2
      $region36: #{conv3d_3x3x3.1} parent=23 // pred_fallthru
        _
    $region24: #{conv3d_3x3x3.1} parent=5 // pred_fallthru
      _
    %p243 = scmp.le.s32.totalorder 1, %s11
    %p244 = scmp.lt.s32.totalorder %s11, 17
    %p245 = pnand %p243, %p244
    %p246 = pneg %p245
    // Predicated region
    $region37: #{conv3d_3x3x3.1} parent=5 // pred_check
      _
    $region38: #{conv3d_3x3x3.1} parent=5 // pred_check_branch
      %248 = sbr.rel (%p245) target = $region40
    $region39: #{conv3d_3x3x3.1} parent=5 // pred_region
      %s249 = ssub.s32 %s11, 1
      %p250 = scmp.lt.s32.totalorder %s20, 1
      %s251 = scalar_select %p250, %s20, 1
      %p252 = scmp.lt.s32.totalorder %s21, 9
      %s253 = scalar_select %p252, %s21, 9
      %s254 = smul.addr %s251, 10
      %s255 = sadd.s32 %s253, %s254
      %s256 = smul.addr %s255, 2
      %s257 = scalar_lea.vmem %s0, %s256
      %p258 = pneg %p51
      %p259 = pneg %p48
      %s260 = sadd.s32 %s21, 1
      %p261 = scmp.lt.s32.totalorder %s20, 1
      %s262 = scalar_select %p261, %s20, 1
      %p263 = scmp.lt.s32.totalorder %s260, 9
      %s264 = scalar_select %p263, %s260, 9
      %s265 = smul.addr %s262, 10
      %s266 = sadd.s32 %s264, %s265
      %s267 = smul.addr %s266, 2
      %s268 = scalar_lea.vmem %s1, %s267
      %p269 = pneg %p81
      %p270 = pneg %p78
      %s271 = sadd.s32 %s21, 2
      %p272 = scmp.lt.s32.totalorder %s20, 1
      %s273 = scalar_select %p272, %s20, 1
      %p274 = scmp.lt.s32.totalorder %s271, 9
      %s275 = scalar_select %p274, %s271, 9
      %s276 = smul.addr %s273, 10
      %s277 = sadd.s32 %s275, %s276
      %s278 = smul.addr %s277, 2
      %s279 = scalar_lea.vmem %s2, %s278
      %p280 = pneg %p111
      %p281 = pneg %p108
      %p282 = pneg %p132
      %p283 = pneg %p129
      %p284 = pneg %p153
      %p285 = pneg %p150
      %p286 = pneg %p181
      %p287 = pneg %p178
      %p288 = scmp.lt.s32.totalorder %s20, 1
      %s289 = scalar_select %p288, %s20, 1
      %p290 = scmp.lt.s32.totalorder %s21, 7
      %s291 = scalar_select %p290, %s21, 7
      %s292 = smul.addr %s289, 8
      %s293 = sadd.s32 %s291, %s292
      %s294 = smul.addr %s293, 8
      %s295 = scalar_lea.vmem %s5, %s294
      %p296 = scmp.lt.s32.totalorder %s20, 1
      %s297 = scalar_select %p296, %s20, 1
      %p298 = scmp.lt.s32.totalorder %s21, 9
      %s299 = scalar_select %p298, %s21, 9
      %s300 = smul.addr %s297, 10
      %s301 = sadd.s32 %s299, %s300
      %s302 = smul.addr %s301, 2
      %s303 = scalar_lea.vmem %s0, %s302
      %s304 = sadd.s32 %s21, 1
      %p305 = scmp.lt.s32.totalorder %s20, 1
      %s306 = scalar_select %p305, %s20, 1
      %p307 = scmp.lt.s32.totalorder %s304, 9
      %s308 = scalar_select %p307, %s304, 9
      %s309 = smul.addr %s306, 10
      %s310 = sadd.s32 %s308, %s309
      %s311 = smul.addr %s310, 2
      %s312 = scalar_lea.vmem %s1, %s311
      %s313 = sadd.s32 %s21, 1
      %s314 = sadd.s32 %s21, 2
      %p315 = scmp.lt.s32.totalorder %s20, 1
      %s316 = scalar_select %p315, %s20, 1
      %p317 = scmp.lt.s32.totalorder %s314, 9
      %s318 = scalar_select %p317, %s314, 9
      %s319 = smul.addr %s316, 10
      %s320 = sadd.s32 %s318, %s319
      %s321 = smul.addr %s320, 2
      %s322 = scalar_lea.vmem %s2, %s321
      %s323 = sadd.s32 %s21, 2
      %p324 = scmp.lt.s32.totalorder %s20, 1
      %s325 = scalar_select %p324, %s20, 1
      %p326 = scmp.lt.s32.totalorder %s21, 7
      %s327 = scalar_select %p326, %s21, 7
      %s328 = smul.addr %s325, 8
      %s329 = sadd.s32 %s327, %s328
      %s330 = smul.addr %s329, 8
      %s331 = scalar_lea.vmem %s5, %s330
      %v333 = vld [vmem:[%s303] sm:$0x3]
      %v334 = vld [vmem:[%s3] sm:$0xf]
      %s335 = scalar_lea.vmem %s3, 4
      %v336 = vld [vmem:[%s335] sm:$0xf]
      %338 = vst [vmem:[#allocation1] ss:$4 sm:$0xff] %v333
      %v339 = vld.sshfl [vmem:[#allocation1] sm:$0xff pattern:$0x73625140]
      %341 = vrot.lane.b32.xlu0 %v339, 127
      %v342 = vpop.permute.xlu0 %341
      %vm343 = vcmask 31744
      %v345 = vsel %vm343, %v336, 0
      %vm347 = vcmask 1041408
      %v349 = vsel %vm347, %v342, 0
      %351 = vmatpush.bf16.msra.mxu0 0
      %352 = vmatpush.bf16.msra.mxu0 0
      %353 = vmatpush.bf16.msra.mxu0 0
      %354 = vmatpush.bf16.msra.mxu0 0
      %355 = vmatpush.bf16.msra.mxu0 0
      %356 = vmatpush.bf16.msra.mxu0 0
      %357 = vmatpush.bf16.msra.mxu0 0
      %358 = vmatpush.bf16.msra.mxu0 %v349
      %359 = vmatmul.bf16.gmra.mxu0 %v345
      %v360 = vpop.f32.mrf.mxu0
      %v361 = vadd.f32 0.0, %v360
      %v362 = vpop.f32.mrf.mxu0
      %363 = vdwg.mxu0
      %v365 = vsel %vm343, %v334, 0
      %v367 = vsel %vm347, %v333, 0
      %369 = vmatpush.bf16.msra.mxu0 0
      %370 = vmatpush.bf16.msra.mxu0 0
      %371 = vmatpush.bf16.msra.mxu0 0
      %372 = vmatpush.bf16.msra.mxu0 0
      %373 = vmatpush.bf16.msra.mxu0 0
      %374 = vmatpush.bf16.msra.mxu0 0
      %375 = vmatpush.bf16.msra.mxu0 0
      %376 = vmatpush.bf16.msra.mxu0 %v367
      %377 = vmatmul.bf16.gmra.mxu0 %v365
      %v378 = vpop.f32.mrf.mxu0
      %v379 = vadd.f32 %v361, %v378
      %v380 = vpop.f32.mrf.mxu0
      %381 = vdwg.mxu0
      %s382 = scalar_lea.vmem %s3, 8
      %v383 = vld [vmem:[%s382] sm:$0xf]
      %384 = vst [vmem:[#allocation1] ss:$4 sm:$0xff] %v333
      %v385 = vld.sshfl [vmem:[#allocation1] sm:$0xff pattern:$0x73625140]
      %387 = vrot.lane.b32.xlu0 %v385, 126
      %v388 = vpop.permute.xlu0 %387
      %v390 = vsel %vm343, %v383, 0
      %v393 = vsel %vm347, %v388, 0
      %395 = vmatpush.bf16.msra.mxu0 0
      %396 = vmatpush.bf16.msra.mxu0 0
      %397 = vmatpush.bf16.msra.mxu0 0
      %398 = vmatpush.bf16.msra.mxu0 0
      %399 = vmatpush.bf16.msra.mxu0 0
      %400 = vmatpush.bf16.msra.mxu0 0
      %401 = vmatpush.bf16.msra.mxu0 0
      %402 = vmatpush.bf16.msra.mxu0 %v393
      %403 = vmatmul.bf16.gmra.mxu0 %v390
      %v404 = vpop.f32.mrf.mxu0
      %v405 = vadd.f32 0.0, %v404
      %v406 = vpop.f32.mrf.mxu0
      %407 = vdwg.mxu0
      %v408 = vadd.f32 %v379, %v405
      %s409 = scalar_lea.vmem %s3, 12
      %v410 = vld [vmem:[%s409] sm:$0xf]
      %411 = vst [vmem:[#allocation1] ss:$4 sm:$0xff] %v333
      %v412 = vld.sshfl [vmem:[#allocation1] sm:$0xff pattern:$0x73625140]
      %414 = vrot.lane.b32.xlu0 %v412, 118
      %v415 = vpop.permute.xlu0 %414
      %v417 = vsel %vm343, %v410, 0
      %v420 = vsel %vm347, %v415, 0
      %422 = vmatpush.bf16.msra.mxu0 0
      %423 = vmatpush.bf16.msra.mxu0 0
      %424 = vmatpush.bf16.msra.mxu0 0
      %425 = vmatpush.bf16.msra.mxu0 0
      %426 = vmatpush.bf16.msra.mxu0 0
      %427 = vmatpush.bf16.msra.mxu0 0
      %428 = vmatpush.bf16.msra.mxu0 0
      %429 = vmatpush.bf16.msra.mxu0 %v420
      %430 = vmatmul.bf16.gmra.mxu0 %v417
      %v431 = vpop.f32.mrf.mxu0
      %v432 = vadd.f32 0.0, %v431
      %v433 = vpop.f32.mrf.mxu0
      %434 = vdwg.mxu0
      %v435 = vadd.f32 %v408, %v432
      %s436 = scalar_lea.vmem %s3, 16
      %v437 = vld [vmem:[%s436] sm:$0xf]
      %438 = vst [vmem:[#allocation1] ss:$4 sm:$0xff] %v333
      %v439 = vld.sshfl [vmem:[#allocation1] sm:$0xff pattern:$0x73625140]
      %441 = vrot.lane.b32.xlu0 %v439, 117
      %v442 = vpop.permute.xlu0 %441
      %v444 = vsel %vm343, %v437, 0
      %v447 = vsel %vm347, %v442, 0
      %449 = vmatpush.bf16.msra.mxu0 0
      %450 = vmatpush.bf16.msra.mxu0 0
      %451 = vmatpush.bf16.msra.mxu0 0
      %452 = vmatpush.bf16.msra.mxu0 0
      %453 = vmatpush.bf16.msra.mxu0 0
      %454 = vmatpush.bf16.msra.mxu0 0
      %455 = vmatpush.bf16.msra.mxu0 0
      %456 = vmatpush.bf16.msra.mxu0 %v447
      %457 = vmatmul.bf16.gmra.mxu0 %v444
      %v458 = vpop.f32.mrf.mxu0
      %v459 = vadd.f32 0.0, %v458
      %v460 = vpop.f32.mrf.mxu0
      %461 = vdwg.mxu0
      %v462 = vadd.f32 %v435, %v459
      %s463 = scalar_lea.vmem %s3, 20
      %v464 = vld [vmem:[%s463] sm:$0xf]
      %465 = vst [vmem:[#allocation1] ss:$4 sm:$0xff] %v333
      %v466 = vld.sshfl [vmem:[#allocation1] sm:$0xff pattern:$0x73625140]
      %468 = vrot.lane.b32.xlu0 %v466, 116
      %v469 = vpop.permute.xlu0 %468
      %v471 = vsel %vm343, %v464, 0
      %v474 = vsel %vm347, %v469, 0
      %476 = vmatpush.bf16.msra.mxu0 0
      %477 = vmatpush.bf16.msra.mxu0 0
      %478 = vmatpush.bf16.msra.mxu0 0
      %479 = vmatpush.bf16.msra.mxu0 0
      %480 = vmatpush.bf16.msra.mxu0 0
      %481 = vmatpush.bf16.msra.mxu0 0
      %482 = vmatpush.bf16.msra.mxu0 0
      %483 = vmatpush.bf16.msra.mxu0 %v474
      %484 = vmatmul.bf16.gmra.mxu0 %v471
      %v485 = vpop.f32.mrf.mxu0
      %v486 = vadd.f32 0.0, %v485
      %v487 = vpop.f32.mrf.mxu0
      %488 = vdwg.mxu0
      %v489 = vadd.f32 %v462, %v486
      %s490 = scalar_lea.vmem %s3, 24
      %v491 = vld [vmem:[%s490] sm:$0xf]
      %492 = vst [vmem:[#allocation1] ss:$4 sm:$0xff] %v333
      %v493 = vld.sshfl [vmem:[#allocation1] sm:$0xff pattern:$0x73625140]
      %495 = vrot.lane.b32.xlu0 %v493, 108
      %v496 = vpop.permute.xlu0 %495
      %v498 = vsel %vm343, %v491, 0
      %v501 = vsel %vm347, %v496, 0
      %503 = vmatpush.bf16.msra.mxu0 0
      %504 = vmatpush.bf16.msra.mxu0 0
      %505 = vmatpush.bf16.msra.mxu0 0
      %506 = vmatpush.bf16.msra.mxu0 0
      %507 = vmatpush.bf16.msra.mxu0 0
      %508 = vmatpush.bf16.msra.mxu0 0
      %509 = vmatpush.bf16.msra.mxu0 0
      %510 = vmatpush.bf16.msra.mxu0 %v501
      %511 = vmatmul.bf16.gmra.mxu0 %v498
      %v512 = vpop.f32.mrf.mxu0
      %v513 = vadd.f32 0.0, %v512
      %v514 = vpop.f32.mrf.mxu0
      %515 = vdwg.mxu0
      %v516 = vadd.f32 %v489, %v513
      %s517 = scalar_lea.vmem %s3, 28
      %v518 = vld [vmem:[%s517] sm:$0xf]
      %519 = vst [vmem:[#allocation1] ss:$4 sm:$0xff] %v333
      %v520 = vld.sshfl [vmem:[#allocation1] sm:$0xff pattern:$0x73625140]
      %522 = vrot.lane.b32.xlu0 %v520, 107
      %v523 = vpop.permute.xlu0 %522
      %v525 = vsel %vm343, %v518, 0
      %v528 = vsel %vm347, %v523, 0
      %530 = vmatpush.bf16.msra.mxu0 0
      %531 = vmatpush.bf16.msra.mxu0 0
      %532 = vmatpush.bf16.msra.mxu0 0
      %533 = vmatpush.bf16.msra.mxu0 0
      %534 = vmatpush.bf16.msra.mxu0 0
      %535 = vmatpush.bf16.msra.mxu0 0
      %536 = vmatpush.bf16.msra.mxu0 0
      %537 = vmatpush.bf16.msra.mxu0 %v528
      %538 = vmatmul.bf16.gmra.mxu0 %v525
      %v539 = vpop.f32.mrf.mxu0
      %v540 = vadd.f32 0.0, %v539
      %v541 = vpop.f32.mrf.mxu0
      %542 = vdwg.mxu0
      %v543 = vadd.f32 %v516, %v540
      %s544 = scalar_lea.vmem %s3, 32
      %v545 = vld [vmem:[%s544] sm:$0xf]
      %546 = vst [vmem:[#allocation1] ss:$4 sm:$0xff] %v333
      %v547 = vld.sshfl [vmem:[#allocation1] sm:$0xff pattern:$0x73625140]
      %549 = vrot.lane.b32.xlu0 %v547, 106
      %v550 = vpop.permute.xlu0 %549
      %v552 = vsel %vm343, %v545, 0
      %v555 = vsel %vm347, %v550, 0
      %557 = vmatpush.bf16.msra.mxu0 0
      %558 = vmatpush.bf16.msra.mxu0 0
      %559 = vmatpush.bf16.msra.mxu0 0
      %560 = vmatpush.bf16.msra.mxu0 0
      %561 = vmatpush.bf16.msra.mxu0 0
      %562 = vmatpush.bf16.msra.mxu0 0
      %563 = vmatpush.bf16.msra.mxu0 0
      %564 = vmatpush.bf16.msra.mxu0 %v555
      %565 = vmatmul.bf16.gmra.mxu0 %v552
      %v566 = vpop.f32.mrf.mxu0
      %v567 = vadd.f32 0.0, %v566
      %v568 = vpop.f32.mrf.mxu0
      %569 = vdwg.mxu0
      %v570 = vadd.f32 %v543, %v567
      %v571 = vld [vmem:[%s312] sm:$0x3]
      %s572 = scalar_lea.vmem %s3, 36
      %v573 = vld [vmem:[%s572] sm:$0xf]
      %v575 = vsel %vm343, %v573, 0
      %v578 = vsel %vm347, %v571, 0
      %580 = vmatpush.bf16.msra.mxu0 0
      %581 = vmatpush.bf16.msra.mxu0 0
      %582 = vmatpush.bf16.msra.mxu0 0
      %583 = vmatpush.bf16.msra.mxu0 0
      %584 = vmatpush.bf16.msra.mxu0 0
      %585 = vmatpush.bf16.msra.mxu0 0
      %586 = vmatpush.bf16.msra.mxu0 0
      %587 = vmatpush.bf16.msra.mxu0 %v578
      %588 = vmatmul.bf16.gmra.mxu0 %v575
      %v589 = vpop.f32.mrf.mxu0
      %v590 = vadd.f32 0.0, %v589
      %v591 = vpop.f32.mrf.mxu0
      %592 = vdwg.mxu0
      %v593 = vadd.f32 %v570, %v590
      %s594 = scalar_lea.vmem %s3, 40
      %v595 = vld [vmem:[%s594] sm:$0xf]
      %596 = vst [vmem:[#allocation1] ss:$4 sm:$0xff] %v571
      %v597 = vld.sshfl [vmem:[#allocation1] sm:$0xff pattern:$0x73625140]
      %599 = vrot.lane.b32.xlu0 %v597, 127
      %v600 = vpop.permute.xlu0 %599
      %v602 = vsel %vm343, %v595, 0
      %v605 = vsel %vm347, %v600, 0
      %607 = vmatpush.bf16.msra.mxu0 0
      %608 = vmatpush.bf16.msra.mxu0 0
      %609 = vmatpush.bf16.msra.mxu0 0
      %610 = vmatpush.bf16.msra.mxu0 0
      %611 = vmatpush.bf16.msra.mxu0 0
      %612 = vmatpush.bf16.msra.mxu0 0
      %613 = vmatpush.bf16.msra.mxu0 0
      %614 = vmatpush.bf16.msra.mxu0 %v605
      %615 = vmatmul.bf16.gmra.mxu0 %v602
      %v616 = vpop.f32.mrf.mxu0
      %v617 = vadd.f32 0.0, %v616
      %v618 = vpop.f32.mrf.mxu0
      %619 = vdwg.mxu0
      %v620 = vadd.f32 %v593, %v617
      %s621 = scalar_lea.vmem %s3, 44
      %v622 = vld [vmem:[%s621] sm:$0xf]
      %623 = vst [vmem:[#allocation1] ss:$4 sm:$0xff] %v571
      %v624 = vld.sshfl [vmem:[#allocation1] sm:$0xff pattern:$0x73625140]
      %626 = vrot.lane.b32.xlu0 %v624, 126
      %v627 = vpop.permute.xlu0 %626
      %v629 = vsel %vm343, %v622, 0
      %v632 = vsel %vm347, %v627, 0
      %634 = vmatpush.bf16.msra.mxu0 0
      %635 = vmatpush.bf16.msra.mxu0 0
      %636 = vmatpush.bf16.msra.mxu0 0
      %637 = vmatpush.bf16.msra.mxu0 0
      %638 = vmatpush.bf16.msra.mxu0 0
      %639 = vmatpush.bf16.msra.mxu0 0
      %640 = vmatpush.bf16.msra.mxu0 0
      %641 = vmatpush.bf16.msra.mxu0 %v632
      %642 = vmatmul.bf16.gmra.mxu0 %v629
      %v643 = vpop.f32.mrf.mxu0
      %v644 = vadd.f32 0.0, %v643
      %v645 = vpop.f32.mrf.mxu0
      %646 = vdwg.mxu0
      %v647 = vadd.f32 %v620, %v644
      %s648 = scalar_lea.vmem %s3, 48
      %v649 = vld [vmem:[%s648] sm:$0xf]
      %650 = vst [vmem:[#allocation1] ss:$4 sm:$0xff] %v571
      %v651 = vld.sshfl [vmem:[#allocation1] sm:$0xff pattern:$0x73625140]
      %653 = vrot.lane.b32.xlu0 %v651, 118
      %v654 = vpop.permute.xlu0 %653
      %v656 = vsel %vm343, %v649, 0
      %v659 = vsel %vm347, %v654, 0
      %661 = vmatpush.bf16.msra.mxu0 0
      %662 = vmatpush.bf16.msra.mxu0 0
      %663 = vmatpush.bf16.msra.mxu0 0
      %664 = vmatpush.bf16.msra.mxu0 0
      %665 = vmatpush.bf16.msra.mxu0 0
      %666 = vmatpush.bf16.msra.mxu0 0
      %667 = vmatpush.bf16.msra.mxu0 0
      %668 = vmatpush.bf16.msra.mxu0 %v659
      %669 = vmatmul.bf16.gmra.mxu0 %v656
      %v670 = vpop.f32.mrf.mxu0
      %v671 = vadd.f32 0.0, %v670
      %v672 = vpop.f32.mrf.mxu0
      %673 = vdwg.mxu0
      %v674 = vadd.f32 %v647, %v671
      %s675 = scalar_lea.vmem %s3, 52
      %v676 = vld [vmem:[%s675] sm:$0xf]
      %677 = vst [vmem:[#allocation1] ss:$4 sm:$0xff] %v571
      %v678 = vld.sshfl [vmem:[#allocation1] sm:$0xff pattern:$0x73625140]
      %680 = vrot.lane.b32.xlu0 %v678, 117
      %v681 = vpop.permute.xlu0 %680
      %v683 = vsel %vm343, %v676, 0
      %v686 = vsel %vm347, %v681, 0
      %688 = vmatpush.bf16.msra.mxu0 0
      %689 = vmatpush.bf16.msra.mxu0 0
      %690 = vmatpush.bf16.msra.mxu0 0
      %691 = vmatpush.bf16.msra.mxu0 0
      %692 = vmatpush.bf16.msra.mxu0 0
      %693 = vmatpush.bf16.msra.mxu0 0
      %694 = vmatpush.bf16.msra.mxu0 0
      %695 = vmatpush.bf16.msra.mxu0 %v686
      %696 = vmatmul.bf16.gmra.mxu0 %v683
      %v697 = vpop.f32.mrf.mxu0
      %v698 = vadd.f32 0.0, %v697
      %v699 = vpop.f32.mrf.mxu0
      %700 = vdwg.mxu0
      %v701 = vadd.f32 %v674, %v698
      %s702 = scalar_lea.vmem %s3, 56
      %v703 = vld [vmem:[%s702] sm:$0xf]
      %704 = vst [vmem:[#allocation1] ss:$4 sm:$0xff] %v571
      %v705 = vld.sshfl [vmem:[#allocation1] sm:$0xff pattern:$0x73625140]
      %707 = vrot.lane.b32.xlu0 %v705, 116
      %v708 = vpop.permute.xlu0 %707
      %v710 = vsel %vm343, %v703, 0
      %v713 = vsel %vm347, %v708, 0
      %715 = vmatpush.bf16.msra.mxu0 0
      %716 = vmatpush.bf16.msra.mxu0 0
      %717 = vmatpush.bf16.msra.mxu0 0
      %718 = vmatpush.bf16.msra.mxu0 0
      %719 = vmatpush.bf16.msra.mxu0 0
      %720 = vmatpush.bf16.msra.mxu0 0
      %721 = vmatpush.bf16.msra.mxu0 0
      %722 = vmatpush.bf16.msra.mxu0 %v713
      %723 = vmatmul.bf16.gmra.mxu0 %v710
      %v724 = vpop.f32.mrf.mxu0
      %v725 = vadd.f32 0.0, %v724
      %v726 = vpop.f32.mrf.mxu0
      %727 = vdwg.mxu0
      %v728 = vadd.f32 %v701, %v725
      %s729 = scalar_lea.vmem %s3, 60
      %v730 = vld [vmem:[%s729] sm:$0xf]
      %731 = vst [vmem:[#allocation1] ss:$4 sm:$0xff] %v571
      %v732 = vld.sshfl [vmem:[#allocation1] sm:$0xff pattern:$0x73625140]
      %734 = vrot.lane.b32.xlu0 %v732, 108
      %v735 = vpop.permute.xlu0 %734
      %v737 = vsel %vm343, %v730, 0
      %v740 = vsel %vm347, %v735, 0
      %742 = vmatpush.bf16.msra.mxu0 0
      %743 = vmatpush.bf16.msra.mxu0 0
      %744 = vmatpush.bf16.msra.mxu0 0
      %745 = vmatpush.bf16.msra.mxu0 0
      %746 = vmatpush.bf16.msra.mxu0 0
      %747 = vmatpush.bf16.msra.mxu0 0
      %748 = vmatpush.bf16.msra.mxu0 0
      %749 = vmatpush.bf16.msra.mxu0 %v740
      %750 = vmatmul.bf16.gmra.mxu0 %v737
      %v751 = vpop.f32.mrf.mxu0
      %v752 = vadd.f32 0.0, %v751
      %v753 = vpop.f32.mrf.mxu0
      %754 = vdwg.mxu0
      %v755 = vadd.f32 %v728, %v752
      %s756 = scalar_lea.vmem %s3, 64
      %v757 = vld [vmem:[%s756] sm:$0xf]
      %758 = vst [vmem:[#allocation1] ss:$4 sm:$0xff] %v571
      %v759 = vld.sshfl [vmem:[#allocation1] sm:$0xff pattern:$0x73625140]
      %761 = vrot.lane.b32.xlu0 %v759, 107
      %v762 = vpop.permute.xlu0 %761
      %v764 = vsel %vm343, %v757, 0
      %v767 = vsel %vm347, %v762, 0
      %769 = vmatpush.bf16.msra.mxu0 0
      %770 = vmatpush.bf16.msra.mxu0 0
      %771 = vmatpush.bf16.msra.mxu0 0
      %772 = vmatpush.bf16.msra.mxu0 0
      %773 = vmatpush.bf16.msra.mxu0 0
      %774 = vmatpush.bf16.msra.mxu0 0
      %775 = vmatpush.bf16.msra.mxu0 0
      %776 = vmatpush.bf16.msra.mxu0 %v767
      %777 = vmatmul.bf16.gmra.mxu0 %v764
      %v778 = vpop.f32.mrf.mxu0
      %v779 = vadd.f32 0.0, %v778
      %v780 = vpop.f32.mrf.mxu0
      %781 = vdwg.mxu0
      %v782 = vadd.f32 %v755, %v779
      %s783 = scalar_lea.vmem %s3, 68
      %v784 = vld [vmem:[%s783] sm:$0xf]
      %785 = vst [vmem:[#allocation1] ss:$4 sm:$0xff] %v571
      %v786 = vld.sshfl [vmem:[#allocation1] sm:$0xff pattern:$0x73625140]
      %788 = vrot.lane.b32.xlu0 %v786, 106
      %v789 = vpop.permute.xlu0 %788
      %v791 = vsel %vm343, %v784, 0
      %v794 = vsel %vm347, %v789, 0
      %796 = vmatpush.bf16.msra.mxu0 0
      %797 = vmatpush.bf16.msra.mxu0 0
      %798 = vmatpush.bf16.msra.mxu0 0
      %799 = vmatpush.bf16.msra.mxu0 0
      %800 = vmatpush.bf16.msra.mxu0 0
      %801 = vmatpush.bf16.msra.mxu0 0
      %802 = vmatpush.bf16.msra.mxu0 0
      %803 = vmatpush.bf16.msra.mxu0 %v794
      %804 = vmatmul.bf16.gmra.mxu0 %v791
      %v805 = vpop.f32.mrf.mxu0
      %v806 = vadd.f32 0.0, %v805
      %v807 = vpop.f32.mrf.mxu0
      %808 = vdwg.mxu0
      %v809 = vadd.f32 %v782, %v806
      %v810 = vld [vmem:[%s322] sm:$0x3]
      %s811 = scalar_lea.vmem %s3, 72
      %v812 = vld [vmem:[%s811] sm:$0xf]
      %v814 = vsel %vm343, %v812, 0
      %v817 = vsel %vm347, %v810, 0
      %819 = vmatpush.bf16.msra.mxu0 0
      %820 = vmatpush.bf16.msra.mxu0 0
      %821 = vmatpush.bf16.msra.mxu0 0
      %822 = vmatpush.bf16.msra.mxu0 0
      %823 = vmatpush.bf16.msra.mxu0 0
      %824 = vmatpush.bf16.msra.mxu0 0
      %825 = vmatpush.bf16.msra.mxu0 0
      %826 = vmatpush.bf16.msra.mxu0 %v817
      %827 = vmatmul.bf16.gmra.mxu0 %v814
      %v828 = vpop.f32.mrf.mxu0
      %v829 = vadd.f32 0.0, %v828
      %v830 = vpop.f32.mrf.mxu0
      %831 = vdwg.mxu0
      %v832 = vadd.f32 %v809, %v829
      %s833 = scalar_lea.vmem %s3, 76
      %v834 = vld [vmem:[%s833] sm:$0xf]
      %835 = vst [vmem:[#allocation1] ss:$4 sm:$0xff] %v810
      %v836 = vld.sshfl [vmem:[#allocation1] sm:$0xff pattern:$0x73625140]
      %838 = vrot.lane.b32.xlu0 %v836, 127
      %v839 = vpop.permute.xlu0 %838
      %v841 = vsel %vm343, %v834, 0
      %v844 = vsel %vm347, %v839, 0
      %846 = vmatpush.bf16.msra.mxu0 0
      %847 = vmatpush.bf16.msra.mxu0 0
      %848 = vmatpush.bf16.msra.mxu0 0
      %849 = vmatpush.bf16.msra.mxu0 0
      %850 = vmatpush.bf16.msra.mxu0 0
      %851 = vmatpush.bf16.msra.mxu0 0
      %852 = vmatpush.bf16.msra.mxu0 0
      %853 = vmatpush.bf16.msra.mxu0 %v844
      %854 = vmatmul.bf16.gmra.mxu0 %v841
      %v855 = vpop.f32.mrf.mxu0
      %v856 = vadd.f32 0.0, %v855
      %v857 = vpop.f32.mrf.mxu0
      %858 = vdwg.mxu0
      %v859 = vadd.f32 %v832, %v856
      %s860 = scalar_lea.vmem %s3, 80
      %v861 = vld [vmem:[%s860] sm:$0xf]
      %862 = vst [vmem:[#allocation1] ss:$4 sm:$0xff] %v810
      %v863 = vld.sshfl [vmem:[#allocation1] sm:$0xff pattern:$0x73625140]
      %865 = vrot.lane.b32.xlu0 %v863, 126
      %v866 = vpop.permute.xlu0 %865
      %v868 = vsel %vm343, %v861, 0
      %v871 = vsel %vm347, %v866, 0
      %873 = vmatpush.bf16.msra.mxu0 0
      %874 = vmatpush.bf16.msra.mxu0 0
      %875 = vmatpush.bf16.msra.mxu0 0
      %876 = vmatpush.bf16.msra.mxu0 0
      %877 = vmatpush.bf16.msra.mxu0 0
      %878 = vmatpush.bf16.msra.mxu0 0
      %879 = vmatpush.bf16.msra.mxu0 0
      %880 = vmatpush.bf16.msra.mxu0 %v871
      %881 = vmatmul.bf16.gmra.mxu0 %v868
      %v882 = vpop.f32.mrf.mxu0
      %v883 = vadd.f32 0.0, %v882
      %v884 = vpop.f32.mrf.mxu0
      %885 = vdwg.mxu0
      %v886 = vadd.f32 %v859, %v883
      %s887 = scalar_lea.vmem %s3, 84
      %v888 = vld [vmem:[%s887] sm:$0xf]
      %889 = vst [vmem:[#allocation1] ss:$4 sm:$0xff] %v810
      %v890 = vld.sshfl [vmem:[#allocation1] sm:$0xff pattern:$0x73625140]
      %892 = vrot.lane.b32.xlu0 %v890, 118
      %v893 = vpop.permute.xlu0 %892
      %v895 = vsel %vm343, %v888, 0
      %v898 = vsel %vm347, %v893, 0
      %900 = vmatpush.bf16.msra.mxu0 0
      %901 = vmatpush.bf16.msra.mxu0 0
      %902 = vmatpush.bf16.msra.mxu0 0
      %903 = vmatpush.bf16.msra.mxu0 0
      %904 = vmatpush.bf16.msra.mxu0 0
      %905 = vmatpush.bf16.msra.mxu0 0
      %906 = vmatpush.bf16.msra.mxu0 0
      %907 = vmatpush.bf16.msra.mxu0 %v898
      %908 = vmatmul.bf16.gmra.mxu0 %v895
      %v909 = vpop.f32.mrf.mxu0
      %v910 = vadd.f32 0.0, %v909
      %v911 = vpop.f32.mrf.mxu0
      %912 = vdwg.mxu0
      %v913 = vadd.f32 %v886, %v910
      %s914 = scalar_lea.vmem %s3, 88
      %v915 = vld [vmem:[%s914] sm:$0xf]
      %916 = vst [vmem:[#allocation1] ss:$4 sm:$0xff] %v810
      %v917 = vld.sshfl [vmem:[#allocation1] sm:$0xff pattern:$0x73625140]
      %919 = vrot.lane.b32.xlu0 %v917, 117
      %v920 = vpop.permute.xlu0 %919
      %v922 = vsel %vm343, %v915, 0
      %v925 = vsel %vm347, %v920, 0
      %927 = vmatpush.bf16.msra.mxu0 0
      %928 = vmatpush.bf16.msra.mxu0 0
      %929 = vmatpush.bf16.msra.mxu0 0
      %930 = vmatpush.bf16.msra.mxu0 0
      %931 = vmatpush.bf16.msra.mxu0 0
      %932 = vmatpush.bf16.msra.mxu0 0
      %933 = vmatpush.bf16.msra.mxu0 0
      %934 = vmatpush.bf16.msra.mxu0 %v925
      %935 = vmatmul.bf16.gmra.mxu0 %v922
      %v936 = vpop.f32.mrf.mxu0
      %v937 = vadd.f32 0.0, %v936
      %v938 = vpop.f32.mrf.mxu0
      %939 = vdwg.mxu0
      %v940 = vadd.f32 %v913, %v937
      %s941 = scalar_lea.vmem %s3, 92
      %v942 = vld [vmem:[%s941] sm:$0xf]
      %943 = vst [vmem:[#allocation1] ss:$4 sm:$0xff] %v810
      %v944 = vld.sshfl [vmem:[#allocation1] sm:$0xff pattern:$0x73625140]
      %946 = vrot.lane.b32.xlu0 %v944, 116
      %v947 = vpop.permute.xlu0 %946
      %v949 = vsel %vm343, %v942, 0
      %v952 = vsel %vm347, %v947, 0
      %954 = vmatpush.bf16.msra.mxu0 0
      %955 = vmatpush.bf16.msra.mxu0 0
      %956 = vmatpush.bf16.msra.mxu0 0
      %957 = vmatpush.bf16.msra.mxu0 0
      %958 = vmatpush.bf16.msra.mxu0 0
      %959 = vmatpush.bf16.msra.mxu0 0
      %960 = vmatpush.bf16.msra.mxu0 0
      %961 = vmatpush.bf16.msra.mxu0 %v952
      %962 = vmatmul.bf16.gmra.mxu0 %v949
      %v963 = vpop.f32.mrf.mxu0
      %v964 = vadd.f32 0.0, %v963
      %v965 = vpop.f32.mrf.mxu0
      %966 = vdwg.mxu0
      %v967 = vadd.f32 %v940, %v964
      %s968 = scalar_lea.vmem %s3, 96
      %v969 = vld [vmem:[%s968] sm:$0xf]
      %970 = vst [vmem:[#allocation1] ss:$4 sm:$0xff] %v810
      %v971 = vld.sshfl [vmem:[#allocation1] sm:$0xff pattern:$0x73625140]
      %973 = vrot.lane.b32.xlu0 %v971, 108
      %v974 = vpop.permute.xlu0 %973
      %v976 = vsel %vm343, %v969, 0
      %v979 = vsel %vm347, %v974, 0
      %981 = vmatpush.bf16.msra.mxu0 0
      %982 = vmatpush.bf16.msra.mxu0 0
      %983 = vmatpush.bf16.msra.mxu0 0
      %984 = vmatpush.bf16.msra.mxu0 0
      %985 = vmatpush.bf16.msra.mxu0 0
      %986 = vmatpush.bf16.msra.mxu0 0
      %987 = vmatpush.bf16.msra.mxu0 0
      %988 = vmatpush.bf16.msra.mxu0 %v979
      %989 = vmatmul.bf16.gmra.mxu0 %v976
      %v990 = vpop.f32.mrf.mxu0
      %v991 = vadd.f32 0.0, %v990
      %v992 = vpop.f32.mrf.mxu0
      %993 = vdwg.mxu0
      %v994 = vadd.f32 %v967, %v991
      %s995 = scalar_lea.vmem %s3, 100
      %v996 = vld [vmem:[%s995] sm:$0xf]
      %997 = vst [vmem:[#allocation1] ss:$4 sm:$0xff] %v810
      %v998 = vld.sshfl [vmem:[#allocation1] sm:$0xff pattern:$0x73625140]
      %1000 = vrot.lane.b32.xlu0 %v998, 107
      %v1001 = vpop.permute.xlu0 %1000
      %v1003 = vsel %vm343, %v996, 0
      %v1006 = vsel %vm347, %v1001, 0
      %1008 = vmatpush.bf16.msra.mxu0 0
      %1009 = vmatpush.bf16.msra.mxu0 0
      %1010 = vmatpush.bf16.msra.mxu0 0
      %1011 = vmatpush.bf16.msra.mxu0 0
      %1012 = vmatpush.bf16.msra.mxu0 0
      %1013 = vmatpush.bf16.msra.mxu0 0
      %1014 = vmatpush.bf16.msra.mxu0 0
      %1015 = vmatpush.bf16.msra.mxu0 %v1006
      %1016 = vmatmul.bf16.gmra.mxu0 %v1003
      %v1017 = vpop.f32.mrf.mxu0
      %v1018 = vadd.f32 0.0, %v1017
      %v1019 = vpop.f32.mrf.mxu0
      %1020 = vdwg.mxu0
      %v1021 = vadd.f32 %v994, %v1018
      %s1022 = scalar_lea.vmem %s3, 104
      %v1023 = vld [vmem:[%s1022] sm:$0xf]
      %1024 = vst [vmem:[#allocation1] ss:$4 sm:$0xff] %v810
      %v1025 = vld.sshfl [vmem:[#allocation1] sm:$0xff pattern:$0x73625140]
      %1027 = vrot.lane.b32.xlu0 %v1025, 106
      %v1028 = vpop.permute.xlu0 %1027
      %v1030 = vsel %vm343, %v1023, 0
      %v1033 = vsel %vm347, %v1028, 0
      %1035 = vmatpush.bf16.msra.mxu0 0
      %1036 = vmatpush.bf16.msra.mxu0 0
      %1037 = vmatpush.bf16.msra.mxu0 0
      %1038 = vmatpush.bf16.msra.mxu0 0
      %1039 = vmatpush.bf16.msra.mxu0 0
      %1040 = vmatpush.bf16.msra.mxu0 0
      %1041 = vmatpush.bf16.msra.mxu0 0
      %1042 = vmatpush.bf16.msra.mxu0 %v1033
      %1043 = vmatmul.bf16.gmra.mxu0 %v1030
      %v1044 = vpop.f32.mrf.mxu0
      %v1045 = vadd.f32 0.0, %v1044
      %v1046 = vpop.f32.mrf.mxu0
      %1047 = vdwg.mxu0
      %v1048 = vadd.f32 %v1021, %v1045
      %v1049 = vld [vmem:[%s4] sm:$0xff]
      %1051 = vset.pattern.permute.xlu0 0
      %1052 = vperm.xlu0 %1051, %v1049
      %v1053 = vpop.permute.xlu0 %1052
      %v1055 = vadd.f32 %v1048, %v1053
      %vm1056 = vcmp.ge.f32.partialorder %v1055, 0.0
      %v1057 = vmul.f32 %v1055, 0.2
      %v1058 = vsel %vm1056, %v1055, %v1057
      %vm1059 = vcmask 818176
      %1060 = vst.msk [vmem:[%s331] sm:$0xff] %vm1059, %v1058
      %p1061 = scmp.lt.s32.totalorder %s20, 1
      %s1062 = scalar_select %p1061, %s20, 1
      %p1063 = scmp.lt.s32.totalorder %s21, 7
      %s1064 = scalar_select %p1063, %s21, 7
      %s1065 = smul.addr %s1062, 8
      %s1066 = sadd.s32 %s1064, %s1065
      %s1067 = smul.addr %s1066, 8
      %s1068 = scalar_lea.vmem %s5, %s1067
      // Predicated region
      $region41: #{conv3d_3x3x3.1} parent=39 // pred_check
        %p1069 = pneg %p178
      $region42: #{conv3d_3x3x3.1} parent=39 // pred_check_branch
        %1071 = sbr.rel (%p1069) target = $region44
      $region43: #{conv3d_3x3x3.1} parent=39 // pred_region
        _
      $region44: #{conv3d_3x3x3.1} parent=39 // pred_fallthru
        _
    $region40: #{conv3d_3x3x3.1} parent=5 // pred_fallthru
      _
    %p1072 = scmp.le.s32.totalorder 2, %s11
    // Predicated region
    $region45: #{conv3d_3x3x3.1} parent=5 // pred_check
      %p1073 = pneg %p1072
    $region46: #{conv3d_3x3x3.1} parent=5 // pred_check_branch
      %1075 = sbr.rel (%p1073) target = $region48
    $region47: #{conv3d_3x3x3.1} parent=5 // pred_region
      %s1076 = ssub.s32 %s11, 2
      // Predicated region
      $region49: #{conv3d_3x3x3.1} parent=47 // pred_check
        %p1077 = pneg %p184
      $region50: #{conv3d_3x3x3.1} parent=47 // pred_check_branch
        %1079 = sbr.rel (%p1077) target = $region52
      $region51: #{conv3d_3x3x3.1} parent=47 // pred_region
        %p1080 = scmp.lt.s32.totalorder %s22, 1
        %s1081 = scalar_select %p1080, %s22, 1
        %p1082 = scmp.lt.s32.totalorder %s23, 7
        %s1083 = scalar_select %p1082, %s23, 7
        %s1084 = smul.addr %s1081, 8
        %s1085 = sadd.s32 %s1083, %s1084
        %s1086 = smul.addr %s1085, 8
        %s1087 = scalar_lea.vmem %s5, %s1086
      $region52: #{conv3d_3x3x3.1} parent=47 // pred_fallthru
        _
    $region48: #{conv3d_3x3x3.1} parent=5 // pred_fallthru
      _
  $region6: #{conv3d_3x3x3.1} parent=0 // loop_footer
    %s15 = sadd.s32 1, %s11
  $region7: #{conv3d_3x3x3.1} parent=0 // loop_footer_branch
    %10 = sbr.rel target = $region3
  $region8: #{conv3d_3x3x3.1} parent=0 // loop_exit
    _

</llo_original>
